<compile_context>
chip_gen: v7x
topology: tpu7x:2x2x1
jax: 0.10.0
libtpu: 0.0.40
codegen_flags: <defaults>
</compile_context>

<pallas_src>
import math

import jax
import jax.numpy as jnp
from jax.experimental import pallas as pl
from jax.experimental.pallas import tpu as pltpu

EPS = 1e-5  # PyTorch BatchNorm2d default eps


def _bottleneck_kernel(x_ref, w1_ref, g1_ref, b1_ref,
                       w2_ref, g2_ref, b2_ref,
                       w3_ref, g3_ref, b3_ref,
                       sdn_ref, sup_ref, pmid_ref, pout_ref,
                       out_ref):
    f32 = jnp.float32

    def bn_act(t, p_ref, gamma_row, beta_row, relu):
        # Training-mode BatchNorm2d (biased batch stats) with a fused scale/shift.
        # P[p*C + c, x*C + c'] = [c == c'] / (N*H*W) simultaneously folds the W
        # pixel positions into per-channel means AND re-broadcasts them across
        # the lane dim, so stats need no lane-sparse reshapes/tiles in-kernel.
        p = p_ref[...]
        colsum = jnp.sum(t, axis=0, keepdims=True)                       # (1, W*C)
        mean_row = jnp.dot(colsum, p, preferred_element_type=f32)        # (1, W*C)
        d = t - mean_row                                                 # centered -> safe variance
        colsq = jnp.sum(d * d, axis=0, keepdims=True)
        var_row = jnp.dot(colsq, p, preferred_element_type=f32)
        y = d * (gamma_row * jax.lax.rsqrt(var_row + EPS)) + beta_row    # one FMA-shaped apply
        return jnp.maximum(y, 0.0) if relu else y

    x = x_ref[...]                                            # (N*H, W*Cin), 128 lanes dense

    # ---- conv1 (1x1) + bn1 + relu: one lane-dense matmul vs kron(I_W, w1) ----
    # TODO(synk): at production channel counts, cast matmul operands to bf16 and
    # switch to a per-group contraction for conv2; skipped here since this toy
    # config is store/VPU-bound, not MXU-bound, and bf16 would exceed the f32
    # reference tolerance.
    t1 = bn_act(jnp.dot(x, w1_ref[...], preferred_element_type=f32),
                pmid_ref, g1_ref[...], b1_ref[...], relu=True)

    # ---- conv2 (3x3, groups=C, pad=1, stride=1) ----
    # Row shifts via exact 0/1 shift matrices (image boundaries pre-zeroed);
    # column shifts + group structure are folded into the three weight slabs.
    t1_dn = jnp.dot(sdn_ref[...], t1, preferred_element_type=f32)   # t1[n, y-1, :, :]
    t1_up = jnp.dot(sup_ref[...], t1, preferred_element_type=f32)   # t1[n, y+1, :, :]
    acc = (jnp.dot(t1_dn, w2_ref[0], preferred_element_type=f32)
           + jnp.dot(t1,    w2_ref[1], preferred_element_type=f32)
           + jnp.dot(t1_up, w2_ref[2], preferred_element_type=f32))
    t2 = bn_act(acc, pmid_ref, g2_ref[...], b2_ref[...], relu=True)

    # ---- conv3 (1x1) + bn3, residual add (downsample=None => Cin == Cout), relu ----
    t3 = bn_act(jnp.dot(t2, w3_ref[...], preferred_element_type=f32),
                pout_ref, g3_ref[...], b3_ref[...], relu=False)
    out_ref[...] = jnp.maximum(t3 + x, 0.0)                   # lane-dense, unmasked store


def bottleneck_forward(x_nchw, params_kernel):
    (w1b, g1r, b1r, w2b, g2r, b2r, w3b, g3r, b3r, sdn, sup, pmid, pout) = params_kernel
    N, Cin, H, W = x_nchw.shape
    WCout = w3b.shape[1]
    # downsample=None: the residual add needs inplanes == planes*4 and stride == 1.
    assert WCout == W * Cin, "Bottleneck with downsample=None requires inplanes == planes*4"

    # NCHW -> NHWC -> lane-dense rows (N*H, W*C).  W*Cin = 128 here, so the whole
    # elementwise path runs at full lane occupancy.
    # TODO(synk): keep the surrounding network NHWC to drop these two transposes.
    x2d = jnp.transpose(x_nchw, (0, 2, 3, 1)).astype(jnp.float32).reshape(N * H, W * Cin)

    out2d = pl.pallas_call(
        _bottleneck_kernel,
        out_shape=jax.ShapeDtypeStruct((N * H, WCout), jnp.float32),
        in_specs=[pl.BlockSpec(memory_space=pltpu.MemorySpace.VMEM)] * 14,
        out_specs=pl.BlockSpec(memory_space=pltpu.MemorySpace.VMEM),
        # Residual path fully consumes x inside the kernel -> reuse its HBM buffer.
        input_output_aliases={0: 0},
    )(x2d, w1b, g1r, b1r, w2b, g2r, b2r, w3b, g3r, b3r, sdn, sup, pmid, pout)
    # TODO(synk): for ResNet-scale shapes this single-invocation design must become
    # a gridded two-phase BN (stat-accumulate pass + normalize/apply pass), with the
    # batch/H axis marked "parallel" (megacore) and VMEM tiles sized for 64 MiB (v7x).

    return jnp.transpose(out2d.reshape(N, H, W, WCout // W), (0, 3, 1, 2))


def make_params(key, inplanes, planes, baseWidth, cardinality, N, H, W):
    """Deterministic synthetic parameters (PyTorch OIHW layout, then kernel layouts)."""
    D = int(math.floor(planes * (baseWidth / 64)))
    C = cardinality
    Dc = D * C
    Cout = planes * 4
    ks = jax.random.split(key, 9)

    # PyTorch-layout conv weights (OIHW), bias=False as in the module.
    w1_t = 0.1 * jax.random.normal(ks[0], (Dc, inplanes, 1, 1), jnp.float32)
    w2_t = 0.1 * jax.random.normal(ks[1], (Dc, D, 3, 3), jnp.float32)   # groups=C
    w3_t = 0.1 * jax.random.normal(ks[2], (Cout, Dc, 1, 1), jnp.float32)
    g1 = 1.0 + 0.1 * jax.random.normal(ks[3], (Dc,), jnp.float32)
    b1 = 0.1 * jax.random.normal(ks[4], (Dc,), jnp.float32)
    g2 = 1.0 + 0.1 * jax.random.normal(ks[5], (Dc,), jnp.float32)
    b2 = 0.1 * jax.random.normal(ks[6], (Dc,), jnp.float32)
    g3 = 1.0 + 0.1 * jax.random.normal(ks[7], (Cout,), jnp.float32)
    b3 = 0.1 * jax.random.normal(ks[8], (Cout,), jnp.float32)

    f32 = jnp.float32
    eyeW = jnp.eye(W, dtype=f32)
    w1 = w1_t[:, :, 0, 0].T                    # (Cin, Dc)  in -> out
    w3 = w3_t[:, :, 0, 0].T                    # (Dc, Cout)
    w1b = jnp.kron(eyeW, w1)                   # (W*Cin, W*Dc): 1x1 conv on lane-dense rows
    w3b = jnp.kron(eyeW, w3)                   # (W*Dc,  W*Cout)

    # conv2 slabs: fold the kx (W) shift and the per-group block-diagonal structure
    # into one (W*Dc, W*Dc) matrix per ky.  shiftW[kx][p, x] = [p == x + kx - 1].
    shiftW = [jnp.eye(W, k=1, dtype=f32), eyeW, jnp.eye(W, k=-1, dtype=f32)]
    slabs = []
    for ky in range(3):
        m = jnp.zeros((W * Dc, W * Dc), f32)
        for kx in range(3):
            blk = jnp.zeros((Dc, Dc), f32)     # per-group (in -> out) block diagonal
            for g in range(C):
                blk = blk.at[g * D:(g + 1) * D, g * D:(g + 1) * D].set(
                    w2_t[g * D:(g + 1) * D, :, ky, kx].T)
            m = m + jnp.kron(shiftW[kx], blk)
        slabs.append(m)
    w2b = jnp.stack(slabs)                     # (3, W*Dc, W*Dc)

    # Row (H) shift matrices with image boundaries zeroed: sdn picks row y-1, sup y+1.
    eyeN = jnp.eye(N, dtype=f32)
    sdn = jnp.kron(eyeN, jnp.eye(H, k=-1, dtype=f32))    # (N*H, N*H)
    sup = jnp.kron(eyeN, jnp.eye(H, k=1, dtype=f32))

    # BN channel fold/broadcast matrices with the 1/(N*H*W) mean scaling pre-folded:
    # (row @ P)[x*C + c] = (1/count) * sum_p row[p*C + c].
    inv_count = 1.0 / float(N * H * W)
    pmid = inv_count * jnp.kron(jnp.ones((W, W), f32), jnp.eye(Dc, dtype=f32))    # (W*Dc, W*Dc)
    pout = inv_count * jnp.kron(jnp.ones((W, W), f32), jnp.eye(Cout, dtype=f32))  # (W*Cout, W*Cout)

    lane_row = lambda v: jnp.tile(v[None, :], (1, W))                  # pre-tiled (1, W*C)
    params_kernel = (w1b, lane_row(g1), lane_row(b1),
                     w2b, lane_row(g2), lane_row(b2),
                     w3b, lane_row(g3), lane_row(b3),
                     sdn, sup, pmid, pout)
    params_torch = (w1_t, w2_t, w3_t, g1, b1, g2, b2, g3, b3, C)
    return params_kernel, params_torch


def reference_forward(x_nchw, params_torch):
    """Pure-JAX reference matching the PyTorch forward (training-mode BN)."""
    w1_t, w2_t, w3_t, g1, b1, g2, b2, g3, b3, C = params_torch
    x = jnp.transpose(x_nchw, (0, 2, 3, 1)).astype(jnp.float32)
    dn = ('NHWC', 'HWIO', 'NHWC')
    hi = jax.lax.Precision.HIGHEST

    def bn(t, gamma, beta):
        mean = jnp.mean(t, axis=(0, 1, 2), keepdims=True)
        var = jnp.mean((t - mean) ** 2, axis=(0, 1, 2), keepdims=True)
        return (t - mean) * jax.lax.rsqrt(var + EPS) * gamma + beta

    w1 = jnp.transpose(w1_t, (2, 3, 1, 0))
    w2 = jnp.transpose(w2_t, (2, 3, 1, 0))
    w3 = jnp.transpose(w3_t, (2, 3, 1, 0))
    t = jax.lax.conv_general_dilated(x, w1, (1, 1), 'VALID',
                                     dimension_numbers=dn, precision=hi)
    t = jnp.maximum(bn(t, g1, b1), 0.0)
    t = jax.lax.conv_general_dilated(t, w2, (1, 1), ((1, 1), (1, 1)),
                                     dimension_numbers=dn,
                                     feature_group_count=C, precision=hi)
    t = jnp.maximum(bn(t, g2, b2), 0.0)
    t = jax.lax.conv_general_dilated(t, w3, (1, 1), 'VALID',
                                     dimension_numbers=dn, precision=hi)
    t = bn(t, g3, b3)
    out = jnp.maximum(t + x, 0.0)
    return jnp.transpose(out, (0, 3, 1, 2))


if __name__ == "__main__":
    # Bottleneck(inplanes=16, planes=4, baseWidth=64, cardinality=2, stride=1)
    #   -> D = 4, Dc = 8, output channels = planes*4 = 16 == inplanes (residual ok)
    inplanes, planes, baseWidth, cardinality = 16, 4, 64, 2
    N, Hs, Ws = 2, 8, 8            # W * Cin = 128 -> exactly one full lane width

    key = jax.random.PRNGKey(0)
    kx_, kp_ = jax.random.split(key)
    x = jax.random.normal(kx_, (N, inplanes, Hs, Ws), jnp.float32)   # NCHW like PyTorch
    params_k, params_t = make_params(kp_, inplanes, planes, baseWidth,
                                     cardinality, N, Hs, Ws)

    out = jax.block_until_ready(bottleneck_forward(x, params_k))
    ref = reference_forward(x, params_t)
    err = float(jnp.max(jnp.abs(out - ref)))
    assert jnp.allclose(out, ref, atol=5e-3, rtol=5e-3), f"max abs err = {err}"
    print("KERNEL_OK")
</pallas_src>

<mosaic_0001>
module attributes {stable_mosaic.version = 11 : i64} {
  func.func @_bottleneck_kernel(%arg0: memref<16x128xf32, #tpu.memory_space<vmem>>, %arg1: memref<128x64xf32, #tpu.memory_space<vmem>>, %arg2: memref<1x64xf32, #tpu.memory_space<vmem>>, %arg3: memref<1x64xf32, #tpu.memory_space<vmem>>, %arg4: memref<3x64x64xf32, #tpu.memory_space<vmem>>, %arg5: memref<1x64xf32, #tpu.memory_space<vmem>>, %arg6: memref<1x64xf32, #tpu.memory_space<vmem>>, %arg7: memref<64x128xf32, #tpu.memory_space<vmem>>, %arg8: memref<1x128xf32, #tpu.memory_space<vmem>>, %arg9: memref<1x128xf32, #tpu.memory_space<vmem>>, %arg10: memref<16x16xf32, #tpu.memory_space<vmem>>, %arg11: memref<16x16xf32, #tpu.memory_space<vmem>>, %arg12: memref<64x64xf32, #tpu.memory_space<vmem>>, %arg13: memref<128x128xf32, #tpu.memory_space<vmem>>, %arg14: memref<16x128xf32, #tpu.memory_space<vmem>>) attributes {dimension_semantics = [], scalar_prefetch = 0 : i64, scratch_operands = 0 : i64, tpu.core_type = #tpu.core_type<tc>} {
    %c0 = arith.constant 0 : index
    %c0_0 = arith.constant 0 : index
    %0 = vector.load %arg0[%c0, %c0_0] : memref<16x128xf32, #tpu.memory_space<vmem>>, vector<16x128xf32>
    %c0_1 = arith.constant 0 : index
    %c0_2 = arith.constant 0 : index
    %1 = vector.load %arg1[%c0_1, %c0_2] : memref<128x64xf32, #tpu.memory_space<vmem>>, vector<128x64xf32>
    %cst = arith.constant dense<0.000000e+00> : vector<16x64xf32>
    %2 = tpu.matmul %0, %1, %cst {dimension_numbers = #tpu.dot_dimension_numbers<[1], [0], [0], [1], [0, 0, 1, 1], [], []>} : vector<16x128xf32>, vector<128x64xf32>, vector<16x64xf32> -> vector<16x64xf32>
    %c0_3 = arith.constant 0 : index
    %c0_4 = arith.constant 0 : index
    %3 = vector.load %arg2[%c0_3, %c0_4] : memref<1x64xf32, #tpu.memory_space<vmem>>, vector<1x64xf32>
    %c0_5 = arith.constant 0 : index
    %c0_6 = arith.constant 0 : index
    %4 = vector.load %arg3[%c0_5, %c0_6] : memref<1x64xf32, #tpu.memory_space<vmem>>, vector<1x64xf32>
    %c0_7 = arith.constant 0 : index
    %c0_8 = arith.constant 0 : index
    %5 = vector.load %arg12[%c0_7, %c0_8] : memref<64x64xf32, #tpu.memory_space<vmem>>, vector<64x64xf32>
    %cst_9 = arith.constant dense<0.000000e+00> : vector<64xf32>
    %6 = vector.multi_reduction <add>, %2, %cst_9 [0] : vector<16x64xf32> to vector<64xf32>
    %7 = vector.shape_cast %6 : vector<64xf32> to vector<1x64xf32>
    %cst_10 = arith.constant dense<0.000000e+00> : vector<1x64xf32>
    %8 = tpu.matmul %7, %5, %cst_10 {dimension_numbers = #tpu.dot_dimension_numbers<[1], [0], [0], [1], [0, 0, 1, 1], [], []>} : vector<1x64xf32>, vector<64x64xf32>, vector<1x64xf32> -> vector<1x64xf32>
    %9 = vector.broadcast %8 : vector<1x64xf32> to vector<16x64xf32>
    %10 = arith.subf %2, %9 : vector<16x64xf32>
    %11 = arith.mulf %10, %10 : vector<16x64xf32>
    %cst_11 = arith.constant dense<0.000000e+00> : vector<64xf32>
    %12 = vector.multi_reduction <add>, %11, %cst_11 [0] : vector<16x64xf32> to vector<64xf32>
    %13 = vector.shape_cast %12 : vector<64xf32> to vector<1x64xf32>
    %cst_12 = arith.constant dense<0.000000e+00> : vector<1x64xf32>
    %14 = tpu.matmul %13, %5, %cst_12 {dimension_numbers = #tpu.dot_dimension_numbers<[1], [0], [0], [1], [0, 0, 1, 1], [], []>} : vector<1x64xf32>, vector<64x64xf32>, vector<1x64xf32> -> vector<1x64xf32>
    %cst_13 = arith.constant 9.99999974E-6 : f32
    %15 = vector.broadcast %cst_13 : f32 to vector<1x64xf32>
    %16 = arith.addf %14, %15 : vector<1x64xf32>
    %17 = math.rsqrt %16 : vector<1x64xf32>
    %18 = arith.mulf %3, %17 : vector<1x64xf32>
    %19 = vector.broadcast %18 : vector<1x64xf32> to vector<16x64xf32>
    %20 = arith.mulf %10, %19 : vector<16x64xf32>
    %21 = vector.broadcast %4 : vector<1x64xf32> to vector<16x64xf32>
    %22 = arith.addf %20, %21 : vector<16x64xf32>
    %cst_14 = arith.constant 0.000000e+00 : f32
    %23 = vector.broadcast %cst_14 : f32 to vector<16x64xf32>
    %24 = arith.maximumf %22, %23 : vector<16x64xf32>
    %c0_15 = arith.constant 0 : index
    %c0_16 = arith.constant 0 : index
    %25 = vector.load %arg10[%c0_15, %c0_16] : memref<16x16xf32, #tpu.memory_space<vmem>>, vector<16x16xf32>
    %cst_17 = arith.constant dense<0.000000e+00> : vector<16x64xf32>
    %26 = tpu.matmul %25, %24, %cst_17 {dimension_numbers = #tpu.dot_dimension_numbers<[1], [0], [0], [1], [0, 0, 1, 1], [], []>} : vector<16x16xf32>, vector<16x64xf32>, vector<16x64xf32> -> vector<16x64xf32>
    %c0_18 = arith.constant 0 : index
    %c0_19 = arith.constant 0 : index
    %27 = vector.load %arg11[%c0_18, %c0_19] : memref<16x16xf32, #tpu.memory_space<vmem>>, vector<16x16xf32>
    %cst_20 = arith.constant dense<0.000000e+00> : vector<16x64xf32>
    %28 = tpu.matmul %27, %24, %cst_20 {dimension_numbers = #tpu.dot_dimension_numbers<[1], [0], [0], [1], [0, 0, 1, 1], [], []>} : vector<16x16xf32>, vector<16x64xf32>, vector<16x64xf32> -> vector<16x64xf32>
    %c0_21 = arith.constant 0 : index
    %c0_22 = arith.constant 0 : index
    %c0_23 = arith.constant 0 : index
    %29 = vector.load %arg4[%c0_21, %c0_22, %c0_23] : memref<3x64x64xf32, #tpu.memory_space<vmem>>, vector<1x64x64xf32>
    %30 = vector.shape_cast %29 : vector<1x64x64xf32> to vector<64x64xf32>
    %cst_24 = arith.constant dense<0.000000e+00> : vector<16x64xf32>
    %31 = tpu.matmul %26, %30, %cst_24 {dimension_numbers = #tpu.dot_dimension_numbers<[1], [0], [0], [1], [0, 0, 1, 1], [], []>} : vector<16x64xf32>, vector<64x64xf32>, vector<16x64xf32> -> vector<16x64xf32>
    %c1 = arith.constant 1 : index
    %c0_25 = arith.constant 0 : index
    %c0_26 = arith.constant 0 : index
    %32 = vector.load %arg4[%c1, %c0_25, %c0_26] : memref<3x64x64xf32, #tpu.memory_space<vmem>>, vector<1x64x64xf32>
    %33 = vector.shape_cast %32 : vector<1x64x64xf32> to vector<64x64xf32>
    %cst_27 = arith.constant dense<0.000000e+00> : vector<16x64xf32>
    %34 = tpu.matmul %24, %33, %cst_27 {dimension_numbers = #tpu.dot_dimension_numbers<[1], [0], [0], [1], [0, 0, 1, 1], [], []>} : vector<16x64xf32>, vector<64x64xf32>, vector<16x64xf32> -> vector<16x64xf32>
    %35 = arith.addf %31, %34 : vector<16x64xf32>
    %c2 = arith.constant 2 : index
    %c0_28 = arith.constant 0 : index
    %c0_29 = arith.constant 0 : index
    %36 = vector.load %arg4[%c2, %c0_28, %c0_29] : memref<3x64x64xf32, #tpu.memory_space<vmem>>, vector<1x64x64xf32>
    %37 = vector.shape_cast %36 : vector<1x64x64xf32> to vector<64x64xf32>
    %cst_30 = arith.constant dense<0.000000e+00> : vector<16x64xf32>
    %38 = tpu.matmul %28, %37, %cst_30 {dimension_numbers = #tpu.dot_dimension_numbers<[1], [0], [0], [1], [0, 0, 1, 1], [], []>} : vector<16x64xf32>, vector<64x64xf32>, vector<16x64xf32> -> vector<16x64xf32>
    %39 = arith.addf %35, %38 : vector<16x64xf32>
    %c0_31 = arith.constant 0 : index
    %c0_32 = arith.constant 0 : index
    %40 = vector.load %arg5[%c0_31, %c0_32] : memref<1x64xf32, #tpu.memory_space<vmem>>, vector<1x64xf32>
    %c0_33 = arith.constant 0 : index
    %c0_34 = arith.constant 0 : index
    %41 = vector.load %arg6[%c0_33, %c0_34] : memref<1x64xf32, #tpu.memory_space<vmem>>, vector<1x64xf32>
    %c0_35 = arith.constant 0 : index
    %c0_36 = arith.constant 0 : index
    %42 = vector.load %arg12[%c0_35, %c0_36] : memref<64x64xf32, #tpu.memory_space<vmem>>, vector<64x64xf32>
    %cst_37 = arith.constant dense<0.000000e+00> : vector<64xf32>
    %43 = vector.multi_reduction <add>, %39, %cst_37 [0] : vector<16x64xf32> to vector<64xf32>
    %44 = vector.shape_cast %43 : vector<64xf32> to vector<1x64xf32>
    %cst_38 = arith.constant dense<0.000000e+00> : vector<1x64xf32>
    %45 = tpu.matmul %44, %42, %cst_38 {dimension_numbers = #tpu.dot_dimension_numbers<[1], [0], [0], [1], [0, 0, 1, 1], [], []>} : vector<1x64xf32>, vector<64x64xf32>, vector<1x64xf32> -> vector<1x64xf32>
    %46 = vector.broadcast %45 : vector<1x64xf32> to vector<16x64xf32>
    %47 = arith.subf %39, %46 : vector<16x64xf32>
    %48 = arith.mulf %47, %47 : vector<16x64xf32>
    %cst_39 = arith.constant dense<0.000000e+00> : vector<64xf32>
    %49 = vector.multi_reduction <add>, %48, %cst_39 [0] : vector<16x64xf32> to vector<64xf32>
    %50 = vector.shape_cast %49 : vector<64xf32> to vector<1x64xf32>
    %cst_40 = arith.constant dense<0.000000e+00> : vector<1x64xf32>
    %51 = tpu.matmul %50, %42, %cst_40 {dimension_numbers = #tpu.dot_dimension_numbers<[1], [0], [0], [1], [0, 0, 1, 1], [], []>} : vector<1x64xf32>, vector<64x64xf32>, vector<1x64xf32> -> vector<1x64xf32>
    %cst_41 = arith.constant 9.99999974E-6 : f32
    %52 = vector.broadcast %cst_41 : f32 to vector<1x64xf32>
    %53 = arith.addf %51, %52 : vector<1x64xf32>
    %54 = math.rsqrt %53 : vector<1x64xf32>
    %55 = arith.mulf %40, %54 : vector<1x64xf32>
    %56 = vector.broadcast %55 : vector<1x64xf32> to vector<16x64xf32>
    %57 = arith.mulf %47, %56 : vector<16x64xf32>
    %58 = vector.broadcast %41 : vector<1x64xf32> to vector<16x64xf32>
    %59 = arith.addf %57, %58 : vector<16x64xf32>
    %cst_42 = arith.constant 0.000000e+00 : f32
    %60 = vector.broadcast %cst_42 : f32 to vector<16x64xf32>
    %61 = arith.maximumf %59, %60 : vector<16x64xf32>
    %c0_43 = arith.constant 0 : index
    %c0_44 = arith.constant 0 : index
    %62 = vector.load %arg7[%c0_43, %c0_44] : memref<64x128xf32, #tpu.memory_space<vmem>>, vector<64x128xf32>
    %cst_45 = arith.constant dense<0.000000e+00> : vector<16x128xf32>
    %63 = tpu.matmul %61, %62, %cst_45 {dimension_numbers = #tpu.dot_dimension_numbers<[1], [0], [0], [1], [0, 0, 1, 1], [], []>} : vector<16x64xf32>, vector<64x128xf32>, vector<16x128xf32> -> vector<16x128xf32>
    %c0_46 = arith.constant 0 : index
    %c0_47 = arith.constant 0 : index
    %64 = vector.load %arg8[%c0_46, %c0_47] : memref<1x128xf32, #tpu.memory_space<vmem>>, vector<1x128xf32>
    %c0_48 = arith.constant 0 : index
    %c0_49 = arith.constant 0 : index
    %65 = vector.load %arg9[%c0_48, %c0_49] : memref<1x128xf32, #tpu.memory_space<vmem>>, vector<1x128xf32>
    %c0_50 = arith.constant 0 : index
    %c0_51 = arith.constant 0 : index
    %66 = vector.load %arg13[%c0_50, %c0_51] : memref<128x128xf32, #tpu.memory_space<vmem>>, vector<128x128xf32>
    %cst_52 = arith.constant dense<0.000000e+00> : vector<128xf32>
    %67 = vector.multi_reduction <add>, %63, %cst_52 [0] : vector<16x128xf32> to vector<128xf32>
    %68 = vector.shape_cast %67 : vector<128xf32> to vector<1x128xf32>
    %cst_53 = arith.constant dense<0.000000e+00> : vector<1x128xf32>
    %69 = tpu.matmul %68, %66, %cst_53 {dimension_numbers = #tpu.dot_dimension_numbers<[1], [0], [0], [1], [0, 0, 1, 1], [], []>} : vector<1x128xf32>, vector<128x128xf32>, vector<1x128xf32> -> vector<1x128xf32>
    %70 = vector.broadcast %69 : vector<1x128xf32> to vector<16x128xf32>
    %71 = arith.subf %63, %70 : vector<16x128xf32>
    %72 = arith.mulf %71, %71 : vector<16x128xf32>
    %cst_54 = arith.constant dense<0.000000e+00> : vector<128xf32>
    %73 = vector.multi_reduction <add>, %72, %cst_54 [0] : vector<16x128xf32> to vector<128xf32>
    %74 = vector.shape_cast %73 : vector<128xf32> to vector<1x128xf32>
    %cst_55 = arith.constant dense<0.000000e+00> : vector<1x128xf32>
    %75 = tpu.matmul %74, %66, %cst_55 {dimension_numbers = #tpu.dot_dimension_numbers<[1], [0], [0], [1], [0, 0, 1, 1], [], []>} : vector<1x128xf32>, vector<128x128xf32>, vector<1x128xf32> -> vector<1x128xf32>
    %cst_56 = arith.constant 9.99999974E-6 : f32
    %76 = vector.broadcast %cst_56 : f32 to vector<1x128xf32>
    %77 = arith.addf %75, %76 : vector<1x128xf32>
    %78 = math.rsqrt %77 : vector<1x128xf32>
    %79 = arith.mulf %64, %78 : vector<1x128xf32>
    %80 = vector.broadcast %79 : vector<1x128xf32> to vector<16x128xf32>
    %81 = arith.mulf %71, %80 : vector<16x128xf32>
    %82 = vector.broadcast %65 : vector<1x128xf32> to vector<16x128xf32>
    %83 = arith.addf %81, %82 : vector<16x128xf32>
    %84 = arith.addf %83, %0 : vector<16x128xf32>
    %cst_57 = arith.constant 0.000000e+00 : f32
    %85 = vector.broadcast %cst_57 : f32 to vector<16x128xf32>
    %86 = arith.maximumf %84, %85 : vector<16x128xf32>
    %c0_58 = arith.constant 0 : index
    %c0_59 = arith.constant 0 : index
    %87 = vector.load %arg14[%c0_58, %c0_59] : memref<16x128xf32, #tpu.memory_space<vmem>>, vector<16x128xf32>
    tpu.vector_store %arg14[%c0_58, %c0_59], %86 {strides = array<i32>} : memref<16x128xf32, #tpu.memory_space<vmem>>, vector<16x128xf32>,
    return
  }
}

</mosaic_0001>

<llo_original>
// kernel: tpu_custom_call.1
$region0: #{tpu_custom_call.1}
  #allocation0 [shape = 'u32[]', space=smem, size = 0x4, offset = 0x4, fixed_abs, tag = 'smem constant byte address 0x4 - core index']
  #allocation1 [shape = 'u32[144,128]{1,0:T(1,128)}', space=vmem, size = 0x12000, scoped, tag = 'internal scratch']
  %s0 = inlined_call_operand.hbm [shape: f32[16,128], index: 0, kind: input, shape index: {}, may-alias: {0,14}]
  %s1 = inlined_call_operand.vmem [shape: f32[128,64], index: 1, kind: input, shape index: {}]
  %s2 = inlined_call_operand.vmem [shape: f32[1,64], index: 2, kind: input, shape index: {}]
  %s3 = inlined_call_operand.vmem [shape: f32[1,64], index: 3, kind: input, shape index: {}]
  %s4 = inlined_call_operand.vmem [shape: f32[3,64,64], index: 4, kind: input, shape index: {}]
  %s5 = inlined_call_operand.hbm [shape: f32[1,64], index: 5, kind: input, shape index: {}]
  %s6 = inlined_call_operand.hbm [shape: f32[1,64], index: 6, kind: input, shape index: {}]
  %s7 = inlined_call_operand.hbm [shape: f32[64,128], index: 7, kind: input, shape index: {}]
  %s8 = inlined_call_operand.hbm [shape: f32[1,128], index: 8, kind: input, shape index: {}]
  %s9 = inlined_call_operand.hbm [shape: f32[1,128], index: 9, kind: input, shape index: {}]
  %s10 = inlined_call_operand.hbm [shape: f32[16,16], index: 10, kind: input, shape index: {}]
  %s11 = inlined_call_operand.hbm [shape: f32[16,16], index: 11, kind: input, shape index: {}]
  %s12 = inlined_call_operand.vmem [shape: f32[64,64], index: 12, kind: input, shape index: {}]
  %s13 = inlined_call_operand.hbm [shape: f32[128,128], index: 13, kind: input, shape index: {}]
  %s14 = inlined_call_operand.hbm [shape: f32[16,128], index: 14, kind: output, shape index: {}, may-alias: {0,14}]
  %s15 = sld [smem:[#allocation0]]
  $region102: #{tpu_custom_call.1} parent=0
    _
  %s17 = ssub.s32 1, %s15
  %s18 = scalar_select 0, %s17, %s15
  $region1: #{tpu_custom_call.1} parent=0
    #allocation2 [shape = 'u8[8192]{0}', space=vmem, size = 0x2000, scoped, tag = 'input window, operand 0, single buffered']
    #allocation3 [shape = 's32[1]{0}', space=sflag, size = 0x4, scoped, tag = 'scoped memory for tpu_custom_call.1']
    #allocation4 [shape = 's32[1]{0}', space=sflag, size = 0x4, scoped, tag = 'scoped memory for tpu_custom_call.1']
    #allocation5 [shape = 'u8[512]{0}', space=vmem, size = 0x400, scoped, tag = 'input window, operand 5, single buffered']
    #allocation6 [shape = 's32[1]{0}', space=sflag, size = 0x4, scoped, tag = 'scoped memory for tpu_custom_call.1']
    #allocation7 [shape = 'u8[512]{0}', space=vmem, size = 0x400, scoped, tag = 'input window, operand 6, single buffered']
    #allocation8 [shape = 'u8[32768]{0}', space=vmem, size = 0x8000, scoped, tag = 'input window, operand 7, single buffered']
    #allocation9 [shape = 's32[1]{0}', space=sflag, size = 0x4, scoped, tag = 'scoped memory for tpu_custom_call.1']
    #allocation10 [shape = 'u8[512]{0}', space=vmem, size = 0x400, scoped, tag = 'input window, operand 8, single buffered']
    #allocation11 [shape = 'u8[512]{0}', space=vmem, size = 0x400, scoped, tag = 'input window, operand 9, single buffered']
    #allocation12 [shape = 's32[1]{0}', space=sflag, size = 0x4, scoped, tag = 'scoped memory for tpu_custom_call.1']
    #allocation13 [shape = 'u8[8192]{0}', space=vmem, size = 0x2000, scoped, tag = 'input window, operand 10, single buffered']
    #allocation14 [shape = 'u8[8192]{0}', space=vmem, size = 0x2000, scoped, tag = 'input window, operand 11, single buffered']
    #allocation15 [shape = 's32[1]{0}', space=sflag, size = 0x4, scoped, tag = 'scoped memory for tpu_custom_call.1']
    #allocation16 [shape = 'u8[65536]{0}', space=vmem, size = 0x10000, scoped, tag = 'input window, operand 13, single buffered']
    #allocation17 [shape = 'u8[8192]{0}', space=vmem, size = 0x2000, scoped, tag = 'output window, operand 0, single buffered']
    %19 = vsyncpa [#allocation3], 0
    %20 = vsyncpa [#allocation6], 0
    %21 = vsyncpa [#allocation9], 0
    %22 = vsyncpa [#allocation12], 0
    %23 = vsyncpa [#allocation15], 0
    %24 = vsyncpa [#allocation4], 0
    // Predicated region
    $region2: #{tpu_custom_call.1} parent=1 // pred_check
      _
    $region3: #{tpu_custom_call.1} parent=1 // pred_check_branch
      %26 = sbr.rel (0) target = $region5
    $region4: #{tpu_custom_call.1} parent=1 // pred_region
      %s28 = ssub.s32 256, 256
      %29 = vsyncadd [#allocation3], %s28
      %s30 = sshll.u32 [#allocation2], 4
      %s31 = int_to_ptr.vmem [resolvable:$true] %s30
      %36 = dma.hbm_to_vmem [thread:$0]  %s0, 256, %s31, [#allocation3], 128, 128, 8
    $region5: #{tpu_custom_call.1} parent=1 // pred_fallthru
      _
    // Predicated region
    $region6: #{tpu_custom_call.1} parent=1 // pred_check
      _
    $region7: #{tpu_custom_call.1} parent=1 // pred_check_branch
      %38 = sbr.rel (0) target = $region9
    $region8: #{tpu_custom_call.1} parent=1 // pred_region
      _
    $region9: #{tpu_custom_call.1} parent=1 // pred_fallthru
      _
    // Predicated region
    $region10: #{tpu_custom_call.1} parent=1 // pred_check
      _
    $region11: #{tpu_custom_call.1} parent=1 // pred_check_branch
      %40 = sbr.rel (0) target = $region13
    $region12: #{tpu_custom_call.1} parent=1 // pred_region
      _
    $region13: #{tpu_custom_call.1} parent=1 // pred_fallthru
      _
    // Predicated region
    $region14: #{tpu_custom_call.1} parent=1 // pred_check
      _
    $region15: #{tpu_custom_call.1} parent=1 // pred_check_branch
      %42 = sbr.rel (0) target = $region17
    $region16: #{tpu_custom_call.1} parent=1 // pred_region
      _
    $region17: #{tpu_custom_call.1} parent=1 // pred_fallthru
      _
    // Predicated region
    $region18: #{tpu_custom_call.1} parent=1 // pred_check
      _
    $region19: #{tpu_custom_call.1} parent=1 // pred_check_branch
      %44 = sbr.rel (0) target = $region21
    $region20: #{tpu_custom_call.1} parent=1 // pred_region
      _
    $region21: #{tpu_custom_call.1} parent=1 // pred_fallthru
      _
    // Predicated region
    $region22: #{tpu_custom_call.1} parent=1 // pred_check
      _
    $region23: #{tpu_custom_call.1} parent=1 // pred_check_branch
      %46 = sbr.rel (0) target = $region25
    $region24: #{tpu_custom_call.1} parent=1 // pred_region
      %s48 = ssub.s32 16, 16
      %49 = vsyncadd [#allocation6], %s48
      %s51 = sshll.u32 [#allocation5], 4
      %s52 = int_to_ptr.vmem [resolvable:$true] %s51
      %54 = dma.hbm_to_vmem [thread:$0]  %s5, 16, %s52, [#allocation6]
    $region25: #{tpu_custom_call.1} parent=1 // pred_fallthru
      _
    // Predicated region
    $region26: #{tpu_custom_call.1} parent=1 // pred_check
      _
    $region27: #{tpu_custom_call.1} parent=1 // pred_check_branch
      %56 = sbr.rel (0) target = $region29
    $region28: #{tpu_custom_call.1} parent=1 // pred_region
      %s58 = ssub.s32 16, 16
      %59 = vsyncadd [#allocation6], %s58
      %s61 = sshll.u32 [#allocation7], 4
      %s62 = int_to_ptr.vmem [resolvable:$true] %s61
      %64 = dma.hbm_to_vmem [thread:$0]  %s6, 16, %s62, [#allocation6]
    $region29: #{tpu_custom_call.1} parent=1 // pred_fallthru
      _
    // Predicated region
    $region30: #{tpu_custom_call.1} parent=1 // pred_check
      _
    $region31: #{tpu_custom_call.1} parent=1 // pred_check_branch
      %66 = sbr.rel (0) target = $region33
    $region32: #{tpu_custom_call.1} parent=1 // pred_region
      %s68 = ssub.s32 1024, 1024
      %69 = vsyncadd [#allocation9], %s68
      %s70 = sshll.u32 [#allocation8], 4
      %s71 = int_to_ptr.vmem [resolvable:$true] %s70
      %76 = dma.hbm_to_vmem [thread:$0]  %s7, 1024, %s71, [#allocation9], 128, 128, 8
    $region33: #{tpu_custom_call.1} parent=1 // pred_fallthru
      _
    // Predicated region
    $region34: #{tpu_custom_call.1} parent=1 // pred_check
      _
    $region35: #{tpu_custom_call.1} parent=1 // pred_check_branch
      %78 = sbr.rel (0) target = $region37
    $region36: #{tpu_custom_call.1} parent=1 // pred_region
      %s80 = ssub.s32 16, 16
      %81 = vsyncadd [#allocation9], %s80
      %s83 = sshll.u32 [#allocation10], 4
      %s84 = int_to_ptr.vmem [resolvable:$true] %s83
      %86 = dma.hbm_to_vmem [thread:$0]  %s8, 16, %s84, [#allocation9]
    $region37: #{tpu_custom_call.1} parent=1 // pred_fallthru
      _
    // Predicated region
    $region38: #{tpu_custom_call.1} parent=1 // pred_check
      _
    $region39: #{tpu_custom_call.1} parent=1 // pred_check_branch
      %88 = sbr.rel (0) target = $region41
    $region40: #{tpu_custom_call.1} parent=1 // pred_region
      %s90 = ssub.s32 16, 16
      %91 = vsyncadd [#allocation12], %s90
      %s93 = sshll.u32 [#allocation11], 4
      %s94 = int_to_ptr.vmem [resolvable:$true] %s93
      %96 = dma.hbm_to_vmem [thread:$0]  %s9, 16, %s94, [#allocation12]
    $region41: #{tpu_custom_call.1} parent=1 // pred_fallthru
      _
    // Predicated region
    $region42: #{tpu_custom_call.1} parent=1 // pred_check
      _
    $region43: #{tpu_custom_call.1} parent=1 // pred_check_branch
      %98 = sbr.rel (0) target = $region45
    $region44: #{tpu_custom_call.1} parent=1 // pred_region
      %s100 = ssub.s32 256, 256
      %101 = vsyncadd [#allocation12], %s100
      %s102 = sshll.u32 [#allocation13], 4
      %s103 = int_to_ptr.vmem [resolvable:$true] %s102
      %108 = dma.hbm_to_vmem [thread:$0]  %s10, 256, %s103, [#allocation12], 128, 128, 8
    $region45: #{tpu_custom_call.1} parent=1 // pred_fallthru
      _
    // Predicated region
    $region46: #{tpu_custom_call.1} parent=1 // pred_check
      _
    $region47: #{tpu_custom_call.1} parent=1 // pred_check_branch
      %110 = sbr.rel (0) target = $region49
    $region48: #{tpu_custom_call.1} parent=1 // pred_region
      %s112 = ssub.s32 256, 256
      %113 = vsyncadd [#allocation15], %s112
      %s114 = sshll.u32 [#allocation14], 4
      %s115 = int_to_ptr.vmem [resolvable:$true] %s114
      %120 = dma.hbm_to_vmem [thread:$0]  %s11, 256, %s115, [#allocation15], 128, 128, 8
    $region49: #{tpu_custom_call.1} parent=1 // pred_fallthru
      _
    // Predicated region
    $region50: #{tpu_custom_call.1} parent=1 // pred_check
      _
    $region51: #{tpu_custom_call.1} parent=1 // pred_check_branch
      %122 = sbr.rel (0) target = $region53
    $region52: #{tpu_custom_call.1} parent=1 // pred_region
      _
    $region53: #{tpu_custom_call.1} parent=1 // pred_fallthru
      _
    // Predicated region
    $region54: #{tpu_custom_call.1} parent=1 // pred_check
      _
    $region55: #{tpu_custom_call.1} parent=1 // pred_check_branch
      %124 = sbr.rel (0) target = $region57
    $region56: #{tpu_custom_call.1} parent=1 // pred_region
      %s126 = ssub.s32 2048, 2048
      %127 = vsyncadd [#allocation15], %s126
      %s128 = sshll.u32 [#allocation16], 4
      %s129 = int_to_ptr.vmem [resolvable:$true] %s128
      %134 = dma.hbm_to_vmem [thread:$0]  %s13, 2048, %s129, [#allocation15], 128, 128, 8
    $region57: #{tpu_custom_call.1} parent=1 // pred_fallthru
      _
    // Predicated region
    $region58: #{tpu_custom_call.1} parent=1 // pred_check
      _
    $region59: #{tpu_custom_call.1} parent=1 // pred_check_branch
      %136 = sbr.rel (0) target = $region61
    $region60: #{tpu_custom_call.1} parent=1 // pred_region
      %137 = dma.done [#allocation3], 256
    $region61: #{tpu_custom_call.1} parent=1 // pred_fallthru
      _
    // Predicated region
    $region62: #{tpu_custom_call.1} parent=1 // pred_check
      _
    $region63: #{tpu_custom_call.1} parent=1 // pred_check_branch
      %139 = sbr.rel (0) target = $region65
    $region64: #{tpu_custom_call.1} parent=1 // pred_region
      %140 = dma.done [#allocation6], 16
    $region65: #{tpu_custom_call.1} parent=1 // pred_fallthru
      _
    // Predicated region
    $region66: #{tpu_custom_call.1} parent=1 // pred_check
      _
    $region67: #{tpu_custom_call.1} parent=1 // pred_check_branch
      %142 = sbr.rel (0) target = $region69
    $region68: #{tpu_custom_call.1} parent=1 // pred_region
      %143 = dma.done [#allocation6], 16
    $region69: #{tpu_custom_call.1} parent=1 // pred_fallthru
      _
    // Predicated region
    $region70: #{tpu_custom_call.1} parent=1 // pred_check
      _
    $region71: #{tpu_custom_call.1} parent=1 // pred_check_branch
      %145 = sbr.rel (0) target = $region73
    $region72: #{tpu_custom_call.1} parent=1 // pred_region
      %146 = dma.done [#allocation9], 1024
    $region73: #{tpu_custom_call.1} parent=1 // pred_fallthru
      _
    // Predicated region
    $region74: #{tpu_custom_call.1} parent=1 // pred_check
      _
    $region75: #{tpu_custom_call.1} parent=1 // pred_check_branch
      %148 = sbr.rel (0) target = $region77
    $region76: #{tpu_custom_call.1} parent=1 // pred_region
      %149 = dma.done [#allocation9], 16
    $region77: #{tpu_custom_call.1} parent=1 // pred_fallthru
      _
    // Predicated region
    $region78: #{tpu_custom_call.1} parent=1 // pred_check
      _
    $region79: #{tpu_custom_call.1} parent=1 // pred_check_branch
      %151 = sbr.rel (0) target = $region81
    $region80: #{tpu_custom_call.1} parent=1 // pred_region
      %152 = dma.done [#allocation12], 16
    $region81: #{tpu_custom_call.1} parent=1 // pred_fallthru
      _
    // Predicated region
    $region82: #{tpu_custom_call.1} parent=1 // pred_check
      _
    $region83: #{tpu_custom_call.1} parent=1 // pred_check_branch
      %154 = sbr.rel (0) target = $region85
    $region84: #{tpu_custom_call.1} parent=1 // pred_region
      %155 = dma.done [#allocation12], 256
    $region85: #{tpu_custom_call.1} parent=1 // pred_fallthru
      _
    // Predicated region
    $region86: #{tpu_custom_call.1} parent=1 // pred_check
      _
    $region87: #{tpu_custom_call.1} parent=1 // pred_check_branch
      %157 = sbr.rel (0) target = $region89
    $region88: #{tpu_custom_call.1} parent=1 // pred_region
      %158 = dma.done [#allocation15], 256
    $region89: #{tpu_custom_call.1} parent=1 // pred_fallthru
      _
    // Predicated region
    $region90: #{tpu_custom_call.1} parent=1 // pred_check
      _
    $region91: #{tpu_custom_call.1} parent=1 // pred_check_branch
      %160 = sbr.rel (0) target = $region93
    $region92: #{tpu_custom_call.1} parent=1 // pred_region
      %161 = dma.done [#allocation15], 2048
    $region93: #{tpu_custom_call.1} parent=1 // pred_fallthru
      _
    %v162 = vld [vmem:[#allocation2] sm:$0xff]
    %v163 = vld [vmem:[#allocation2 + $0x8] sm:$0xff]
    %v164 = vld [vmem:[%s1] sm:$0xff]
    %v165 = vld [vmem:[%s1 + $0x8] sm:$0xff]
    %v166 = vld [vmem:[%s1 + $0x10] sm:$0xff]
    %v167 = vld [vmem:[%s1 + $0x18] sm:$0xff]
    %v168 = vld [vmem:[%s1 + $0x20] sm:$0xff]
    %v169 = vld [vmem:[%s1 + $0x28] sm:$0xff]
    %v170 = vld [vmem:[%s1 + $0x30] sm:$0xff]
    %v171 = vld [vmem:[%s1 + $0x38] sm:$0xff]
    %v172 = vld [vmem:[%s1 + $0x40] sm:$0xff]
    %v173 = vld [vmem:[%s1 + $0x48] sm:$0xff]
    %v174 = vld [vmem:[%s1 + $0x50] sm:$0xff]
    %v175 = vld [vmem:[%s1 + $0x58] sm:$0xff]
    %v176 = vld [vmem:[%s1 + $0x60] sm:$0xff]
    %v177 = vld [vmem:[%s1 + $0x68] sm:$0xff]
    %v178 = vld [vmem:[%s1 + $0x70] sm:$0xff]
    %v179 = vld [vmem:[%s1 + $0x78] sm:$0xff]
    %180 = vmatprep.subr.mxu0 0.0
    %181 = vmatpush1.msra.mxu0 %v164
    %182 = vmatprep.subr.mxu0 0.0
    %183 = vmatpush1.msra.mxu0 %v165
    %184 = vmatprep.subr.mxu0 0.0
    %185 = vmatpush1.msra.mxu0 %v166
    %186 = vmatprep.subr.mxu0 0.0
    %187 = vmatpush1.msra.mxu0 %v167
    %188 = vmatprep.subr.mxu0 0.0
    %189 = vmatpush1.msra.mxu0 %v168
    %190 = vmatprep.subr.mxu0 0.0
    %191 = vmatpush1.msra.mxu0 %v169
    %192 = vmatprep.subr.mxu0 0.0
    %193 = vmatpush1.msra.mxu0 %v170
    %194 = vmatprep.subr.mxu0 0.0
    %195 = vmatpush1.msra.mxu0 %v171
    %196 = vmatprep.subr.mxu0 0.0
    %197 = vmatpush1.msra.mxu0 %v172
    %198 = vmatprep.subr.mxu0 0.0
    %199 = vmatpush1.msra.mxu0 %v173
    %200 = vmatprep.subr.mxu0 0.0
    %201 = vmatpush1.msra.mxu0 %v174
    %202 = vmatprep.subr.mxu0 0.0
    %203 = vmatpush1.msra.mxu0 %v175
    %204 = vmatprep.subr.mxu0 0.0
    %205 = vmatpush1.msra.mxu0 %v176
    %206 = vmatprep.subr.mxu0 0.0
    %207 = vmatpush1.msra.mxu0 %v177
    %208 = vmatprep.subr.mxu0 0.0
    %209 = vmatpush1.msra.mxu0 %v178
    %210 = vmatprep.subr.mxu0 0.0
    %211 = vmatpush1.msra.mxu0 %v179
    %212 = vmatprep.subr.mxu0 0.0
    %213 = vmatpush1.msra.mxu0 0.0
    %214 = vmatprep.subr.mxu0 0.0
    %215 = vmatpush1.msra.mxu0 0.0
    %216 = vmatprep.subr.mxu0 0.0
    %217 = vmatpush1.msra.mxu0 0.0
    %218 = vmatprep.subr.mxu0 0.0
    %219 = vmatpush1.msra.mxu0 0.0
    %220 = vmatprep.subr.mxu0 0.0
    %221 = vmatpush1.msra.mxu0 0.0
    %222 = vmatprep.subr.mxu0 0.0
    %223 = vmatpush1.msra.mxu0 0.0
    %224 = vmatprep.subr.mxu0 0.0
    %225 = vmatpush1.msra.mxu0 0.0
    %226 = vmatprep.subr.mxu0 0.0
    %227 = vmatpush1.msra.mxu0 0.0
    %228 = vmatprep.subr.mxu0 0.0
    %229 = vmatpush1.msra.mxu0 0.0
    %230 = vmatprep.subr.mxu0 0.0
    %231 = vmatpush1.msra.mxu0 0.0
    %232 = vmatprep.subr.mxu0 0.0
    %233 = vmatpush1.msra.mxu0 0.0
    %234 = vmatprep.subr.mxu0 0.0
    %235 = vmatpush1.msra.mxu0 0.0
    %236 = vmatprep.subr.mxu0 0.0
    %237 = vmatpush1.msra.mxu0 0.0
    %238 = vmatprep.subr.mxu0 0.0
    %239 = vmatpush1.msra.mxu0 0.0
    %240 = vmatprep.subr.mxu0 0.0
    %241 = vmatpush1.msra.mxu0 0.0
    %242 = vmatprep.subr.mxu0 0.0
    %243 = vmatpush1.msra.mxu0 0.0
    %244 = vmatprep.mubr.f32.mxu0 0.0
    %245 = vmatmul.mubr.f32.gmra.mrb[0].mxu0 %v162
    %v246 = vpop.f32.mrb[0].mxu0
    %v247 = vadd.f32 0.0, %v246
    %v248 = vpop.f32.mrb[0].mxu0
    %249 = vmatprep.mubr.f32.mxu0 0.0
    %250 = vmatmul.mubr.f32.gmra.mrb[0].mxu0 %v163
    %v251 = vpop.f32.mrb[0].mxu0
    %v252 = vadd.f32 0.0, %v251
    %v253 = vpop.f32.mrb[0].mxu0
    %254 = vdwg.mxu0
    %v255 = vld [vmem:[%s2] sm:$0x1]
    %v256 = vld [vmem:[%s3] sm:$0x1]
    %v257 = vld [vmem:[%s12] sm:$0xff]
    %v258 = vld [vmem:[%s12 + $0x8] sm:$0xff]
    %v259 = vld [vmem:[%s12 + $0x10] sm:$0xff]
    %v260 = vld [vmem:[%s12 + $0x18] sm:$0xff]
    %v261 = vld [vmem:[%s12 + $0x20] sm:$0xff]
    %v262 = vld [vmem:[%s12 + $0x28] sm:$0xff]
    %v263 = vld [vmem:[%s12 + $0x30] sm:$0xff]
    %v264 = vld [vmem:[%s12 + $0x38] sm:$0xff]
    %vm265 = vcmask 523264
    %v266 = vsel %vm265, %v247, 0.0
    %v267 = vsel %vm265, %v252, 0.0
    %v268 = vadd.f32 %v266, %v267
    %v269 = vrot.slane %v268, 4
    %v270 = vadd.f32 %v268, %v269
    %v271 = vrot.slane %v270, 2
    %v272 = vadd.f32 %v270, %v271
    %v273 = vrot.slane %v272, 1
    %v274 = vadd.f32 %v272, %v273
    %v276 = vsel %vm265, %v274, 0
    %278 = vmatprep.subr.mxu0 0.0
    %279 = vmatpush1.msra.mxu0 %v257
    %280 = vmatprep.subr.mxu0 0.0
    %281 = vmatpush1.msra.mxu0 %v258
    %282 = vmatprep.subr.mxu0 0.0
    %283 = vmatpush1.msra.mxu0 %v259
    %284 = vmatprep.subr.mxu0 0.0
    %285 = vmatpush1.msra.mxu0 %v260
    %286 = vmatprep.subr.mxu0 0.0
    %287 = vmatpush1.msra.mxu0 %v261
    %288 = vmatprep.subr.mxu0 0.0
    %289 = vmatpush1.msra.mxu0 %v262
    %290 = vmatprep.subr.mxu0 0.0
    %291 = vmatpush1.msra.mxu0 %v263
    %292 = vmatprep.subr.mxu0 0.0
    %293 = vmatpush1.msra.mxu0 %v264
    %294 = vmatprep.subr.mxu0 0.0
    %295 = vmatpush1.msra.mxu0 0.0
    %296 = vmatprep.subr.mxu0 0.0
    %297 = vmatpush1.msra.mxu0 0.0
    %298 = vmatprep.subr.mxu0 0.0
    %299 = vmatpush1.msra.mxu0 0.0
    %300 = vmatprep.subr.mxu0 0.0
    %301 = vmatpush1.msra.mxu0 0.0
    %302 = vmatprep.subr.mxu0 0.0
    %303 = vmatpush1.msra.mxu0 0.0
    %304 = vmatprep.subr.mxu0 0.0
    %305 = vmatpush1.msra.mxu0 0.0
    %306 = vmatprep.subr.mxu0 0.0
    %307 = vmatpush1.msra.mxu0 0.0
    %308 = vmatprep.subr.mxu0 0.0
    %309 = vmatpush1.msra.mxu0 0.0
    %310 = vmatprep.subr.mxu0 0.0
    %311 = vmatpush1.msra.mxu0 0.0
    %312 = vmatprep.subr.mxu0 0.0
    %313 = vmatpush1.msra.mxu0 0.0
    %314 = vmatprep.subr.mxu0 0.0
    %315 = vmatpush1.msra.mxu0 0.0
    %316 = vmatprep.subr.mxu0 0.0
    %317 = vmatpush1.msra.mxu0 0.0
    %318 = vmatprep.subr.mxu0 0.0
    %319 = vmatpush1.msra.mxu0 0.0
    %320 = vmatprep.subr.mxu0 0.0
    %321 = vmatpush1.msra.mxu0 0.0
    %322 = vmatprep.subr.mxu0 0.0
    %323 = vmatpush1.msra.mxu0 0.0
    %324 = vmatprep.subr.mxu0 0.0
    %325 = vmatpush1.msra.mxu0 0.0
    %326 = vmatprep.subr.mxu0 0.0
    %327 = vmatpush1.msra.mxu0 0.0
    %328 = vmatprep.subr.mxu0 0.0
    %329 = vmatpush1.msra.mxu0 0.0
    %330 = vmatprep.subr.mxu0 0.0
    %331 = vmatpush1.msra.mxu0 0.0
    %332 = vmatprep.subr.mxu0 0.0
    %333 = vmatpush1.msra.mxu0 0.0
    %334 = vmatprep.subr.mxu0 0.0
    %335 = vmatpush1.msra.mxu0 0.0
    %336 = vmatprep.subr.mxu0 0.0
    %337 = vmatpush1.msra.mxu0 0.0
    %338 = vmatprep.subr.mxu0 0.0
    %339 = vmatpush1.msra.mxu0 0.0
    %340 = vmatprep.subr.mxu0 0.0
    %341 = vmatpush1.msra.mxu0 0.0
    %342 = vmatprep.mubr.f32.mxu0 0.0
    %343 = vmatmul.mubr.f32.gmra.mrb[0].mxu0 %v276
    %v344 = vpop.f32.mrb[0].mxu0
    %v345 = vadd.f32 0.0, %v344
    %v346 = vpop.f32.mrb[0].mxu0
    %347 = vdwg.mxu0
    %v348 = vlaneseq
    %v349 = vshrl.u32 %v348, 7
    %v350 = vsub.s32 0, %v349
    %v351 = vrot.slane %v345, %v350
    %v352 = vsub.f32 %v247, %v351
    %v353 = vsub.f32 %v252, %v351
    %v354 = vmul.f32 %v352, %v352
    %v355 = vmul.f32 %v353, %v353
    %v356 = vsel %vm265, %v354, 0.0
    %v357 = vsel %vm265, %v355, 0.0
    %v358 = vadd.f32 %v356, %v357
    %v359 = vrot.slane %v358, 4
    %v360 = vadd.f32 %v358, %v359
    %v361 = vrot.slane %v360, 2
    %v362 = vadd.f32 %v360, %v361
    %v363 = vrot.slane %v362, 1
    %v364 = vadd.f32 %v362, %v363
    %v366 = vsel %vm265, %v364, 0
    %368 = vmatprep.subr.mxu0 0.0
    %369 = vmatpush1.msra.mxu0 %v257
    %370 = vmatprep.subr.mxu0 0.0
    %371 = vmatpush1.msra.mxu0 %v258
    %372 = vmatprep.subr.mxu0 0.0
    %373 = vmatpush1.msra.mxu0 %v259
    %374 = vmatprep.subr.mxu0 0.0
    %375 = vmatpush1.msra.mxu0 %v260
    %376 = vmatprep.subr.mxu0 0.0
    %377 = vmatpush1.msra.mxu0 %v261
    %378 = vmatprep.subr.mxu0 0.0
    %379 = vmatpush1.msra.mxu0 %v262
    %380 = vmatprep.subr.mxu0 0.0
    %381 = vmatpush1.msra.mxu0 %v263
    %382 = vmatprep.subr.mxu0 0.0
    %383 = vmatpush1.msra.mxu0 %v264
    %384 = vmatprep.subr.mxu0 0.0
    %385 = vmatpush1.msra.mxu0 0.0
    %386 = vmatprep.subr.mxu0 0.0
    %387 = vmatpush1.msra.mxu0 0.0
    %388 = vmatprep.subr.mxu0 0.0
    %389 = vmatpush1.msra.mxu0 0.0
    %390 = vmatprep.subr.mxu0 0.0
    %391 = vmatpush1.msra.mxu0 0.0
    %392 = vmatprep.subr.mxu0 0.0
    %393 = vmatpush1.msra.mxu0 0.0
    %394 = vmatprep.subr.mxu0 0.0
    %395 = vmatpush1.msra.mxu0 0.0
    %396 = vmatprep.subr.mxu0 0.0
    %397 = vmatpush1.msra.mxu0 0.0
    %398 = vmatprep.subr.mxu0 0.0
    %399 = vmatpush1.msra.mxu0 0.0
    %400 = vmatprep.subr.mxu0 0.0
    %401 = vmatpush1.msra.mxu0 0.0
    %402 = vmatprep.subr.mxu0 0.0
    %403 = vmatpush1.msra.mxu0 0.0
    %404 = vmatprep.subr.mxu0 0.0
    %405 = vmatpush1.msra.mxu0 0.0
    %406 = vmatprep.subr.mxu0 0.0
    %407 = vmatpush1.msra.mxu0 0.0
    %408 = vmatprep.subr.mxu0 0.0
    %409 = vmatpush1.msra.mxu0 0.0
    %410 = vmatprep.subr.mxu0 0.0
    %411 = vmatpush1.msra.mxu0 0.0
    %412 = vmatprep.subr.mxu0 0.0
    %413 = vmatpush1.msra.mxu0 0.0
    %414 = vmatprep.subr.mxu0 0.0
    %415 = vmatpush1.msra.mxu0 0.0
    %416 = vmatprep.subr.mxu0 0.0
    %417 = vmatpush1.msra.mxu0 0.0
    %418 = vmatprep.subr.mxu0 0.0
    %419 = vmatpush1.msra.mxu0 0.0
    %420 = vmatprep.subr.mxu0 0.0
    %421 = vmatpush1.msra.mxu0 0.0
    %422 = vmatprep.subr.mxu0 0.0
    %423 = vmatpush1.msra.mxu0 0.0
    %424 = vmatprep.subr.mxu0 0.0
    %425 = vmatpush1.msra.mxu0 0.0
    %426 = vmatprep.subr.mxu0 0.0
    %427 = vmatpush1.msra.mxu0 0.0
    %428 = vmatprep.subr.mxu0 0.0
    %429 = vmatpush1.msra.mxu0 0.0
    %430 = vmatprep.subr.mxu0 0.0
    %431 = vmatpush1.msra.mxu0 0.0
    %432 = vmatprep.mubr.f32.mxu0 0.0
    %433 = vmatmul.mubr.f32.gmra.mrb[0].mxu0 %v366
    %v434 = vpop.f32.mrb[0].mxu0
    %v435 = vadd.f32 1e-05, %v434
    %v436 = vpop.f32.mrb[0].mxu0
    %437 = vdwg.mxu0
    %v438 = vrsqrt.pop %v435
    %v439 = vmul.f32 %v255, %v438
    %v441 = vlaneseq
    %v442 = vshrl.u32 %v441, 7
    %v443 = vsub.s32 0, %v442
    %v444 = vrot.slane %v439, %v443
    %v446 = vmul.f32 %v352, %v444
    %v447 = vmul.f32 %v353, %v444
    %v449 = vlaneseq
    %v450 = vshrl.u32 %v449, 7
    %v451 = vsub.s32 0, %v450
    %v452 = vrot.slane %v256, %v451
    %v454 = vadd.f32 %v446, %v452
    %v455 = vadd.f32 %v447, %v452
    %v456 = vmax.f32 %v454, 0.0
    %v457 = vmax.f32 %v455, 0.0
    %v458 = vld [vmem:[#allocation13] sm:$0xff]
    %v459 = vld [vmem:[#allocation13 + $0x8] sm:$0xff]
    %vm460 = vcmask 130048
    %v462 = vsel %vm460, %v458, 0
    %v465 = vsel %vm460, %v459, 0
    %467 = vmatprep.subr.mxu0 0.0
    %468 = vmatpush1.msra.mxu0 %v456
    %469 = vmatprep.subr.mxu0 0.0
    %470 = vmatpush1.msra.mxu0 %v457
    %471 = vmatprep.subr.mxu0 0.0
    %472 = vmatpush1.msra.mxu0 0.0
    %473 = vmatprep.subr.mxu0 0.0
    %474 = vmatpush1.msra.mxu0 0.0
    %475 = vmatprep.subr.mxu0 0.0
    %476 = vmatpush1.msra.mxu0 0.0
    %477 = vmatprep.subr.mxu0 0.0
    %478 = vmatpush1.msra.mxu0 0.0
    %479 = vmatprep.subr.mxu0 0.0
    %480 = vmatpush1.msra.mxu0 0.0
    %481 = vmatprep.subr.mxu0 0.0
    %482 = vmatpush1.msra.mxu0 0.0
    %483 = vmatprep.subr.mxu0 0.0
    %484 = vmatpush1.msra.mxu0 0.0
    %485 = vmatprep.subr.mxu0 0.0
    %486 = vmatpush1.msra.mxu0 0.0
    %487 = vmatprep.subr.mxu0 0.0
    %488 = vmatpush1.msra.mxu0 0.0
    %489 = vmatprep.subr.mxu0 0.0
    %490 = vmatpush1.msra.mxu0 0.0
    %491 = vmatprep.subr.mxu0 0.0
    %492 = vmatpush1.msra.mxu0 0.0
    %493 = vmatprep.subr.mxu0 0.0
    %494 = vmatpush1.msra.mxu0 0.0
    %495 = vmatprep.subr.mxu0 0.0
    %496 = vmatpush1.msra.mxu0 0.0
    %497 = vmatprep.subr.mxu0 0.0
    %498 = vmatpush1.msra.mxu0 0.0
    %499 = vmatprep.subr.mxu0 0.0
    %500 = vmatpush1.msra.mxu0 0.0
    %501 = vmatprep.subr.mxu0 0.0
    %502 = vmatpush1.msra.mxu0 0.0
    %503 = vmatprep.subr.mxu0 0.0
    %504 = vmatpush1.msra.mxu0 0.0
    %505 = vmatprep.subr.mxu0 0.0
    %506 = vmatpush1.msra.mxu0 0.0
    %507 = vmatprep.subr.mxu0 0.0
    %508 = vmatpush1.msra.mxu0 0.0
    %509 = vmatprep.subr.mxu0 0.0
    %510 = vmatpush1.msra.mxu0 0.0
    %511 = vmatprep.subr.mxu0 0.0
    %512 = vmatpush1.msra.mxu0 0.0
    %513 = vmatprep.subr.mxu0 0.0
    %514 = vmatpush1.msra.mxu0 0.0
    %515 = vmatprep.subr.mxu0 0.0
    %516 = vmatpush1.msra.mxu0 0.0
    %517 = vmatprep.subr.mxu0 0.0
    %518 = vmatpush1.msra.mxu0 0.0
    %519 = vmatprep.subr.mxu0 0.0
    %520 = vmatpush1.msra.mxu0 0.0
    %521 = vmatprep.subr.mxu0 0.0
    %522 = vmatpush1.msra.mxu0 0.0
    %523 = vmatprep.subr.mxu0 0.0
    %524 = vmatpush1.msra.mxu0 0.0
    %525 = vmatprep.subr.mxu0 0.0
    %526 = vmatpush1.msra.mxu0 0.0
    %527 = vmatprep.subr.mxu0 0.0
    %528 = vmatpush1.msra.mxu0 0.0
    %529 = vmatprep.subr.mxu0 0.0
    %530 = vmatpush1.msra.mxu0 0.0
    %531 = vmatprep.mubr.f32.mxu0 0.0
    %532 = vmatmul.mubr.f32.gmra.mrb[0].mxu0 %v462
    %v533 = vpop.f32.mrb[0].mxu0
    %v534 = vadd.f32 0.0, %v533
    %v535 = vpop.f32.mrb[0].mxu0
    %536 = vmatprep.mubr.f32.mxu0 0.0
    %537 = vmatmul.mubr.f32.gmra.mrb[0].mxu0 %v465
    %v538 = vpop.f32.mrb[0].mxu0
    %v539 = vadd.f32 0.0, %v538
    %v540 = vpop.f32.mrb[0].mxu0
    %541 = vdwg.mxu0
    %v542 = vld [vmem:[#allocation14] sm:$0xff]
    %v543 = vld [vmem:[#allocation14 + $0x8] sm:$0xff]
    %v545 = vsel %vm460, %v542, 0
    %v548 = vsel %vm460, %v543, 0
    %550 = vmatprep.subr.mxu0 0.0
    %551 = vmatpush1.msra.mxu0 %v456
    %552 = vmatprep.subr.mxu0 0.0
    %553 = vmatpush1.msra.mxu0 %v457
    %554 = vmatprep.subr.mxu0 0.0
    %555 = vmatpush1.msra.mxu0 0.0
    %556 = vmatprep.subr.mxu0 0.0
    %557 = vmatpush1.msra.mxu0 0.0
    %558 = vmatprep.subr.mxu0 0.0
    %559 = vmatpush1.msra.mxu0 0.0
    %560 = vmatprep.subr.mxu0 0.0
    %561 = vmatpush1.msra.mxu0 0.0
    %562 = vmatprep.subr.mxu0 0.0
    %563 = vmatpush1.msra.mxu0 0.0
    %564 = vmatprep.subr.mxu0 0.0
    %565 = vmatpush1.msra.mxu0 0.0
    %566 = vmatprep.subr.mxu0 0.0
    %567 = vmatpush1.msra.mxu0 0.0
    %568 = vmatprep.subr.mxu0 0.0
    %569 = vmatpush1.msra.mxu0 0.0
    %570 = vmatprep.subr.mxu0 0.0
    %571 = vmatpush1.msra.mxu0 0.0
    %572 = vmatprep.subr.mxu0 0.0
    %573 = vmatpush1.msra.mxu0 0.0
    %574 = vmatprep.subr.mxu0 0.0
    %575 = vmatpush1.msra.mxu0 0.0
    %576 = vmatprep.subr.mxu0 0.0
    %577 = vmatpush1.msra.mxu0 0.0
    %578 = vmatprep.subr.mxu0 0.0
    %579 = vmatpush1.msra.mxu0 0.0
    %580 = vmatprep.subr.mxu0 0.0
    %581 = vmatpush1.msra.mxu0 0.0
    %582 = vmatprep.subr.mxu0 0.0
    %583 = vmatpush1.msra.mxu0 0.0
    %584 = vmatprep.subr.mxu0 0.0
    %585 = vmatpush1.msra.mxu0 0.0
    %586 = vmatprep.subr.mxu0 0.0
    %587 = vmatpush1.msra.mxu0 0.0
    %588 = vmatprep.subr.mxu0 0.0
    %589 = vmatpush1.msra.mxu0 0.0
    %590 = vmatprep.subr.mxu0 0.0
    %591 = vmatpush1.msra.mxu0 0.0
    %592 = vmatprep.subr.mxu0 0.0
    %593 = vmatpush1.msra.mxu0 0.0
    %594 = vmatprep.subr.mxu0 0.0
    %595 = vmatpush1.msra.mxu0 0.0
    %596 = vmatprep.subr.mxu0 0.0
    %597 = vmatpush1.msra.mxu0 0.0
    %598 = vmatprep.subr.mxu0 0.0
    %599 = vmatpush1.msra.mxu0 0.0
    %600 = vmatprep.subr.mxu0 0.0
    %601 = vmatpush1.msra.mxu0 0.0
    %602 = vmatprep.subr.mxu0 0.0
    %603 = vmatpush1.msra.mxu0 0.0
    %604 = vmatprep.subr.mxu0 0.0
    %605 = vmatpush1.msra.mxu0 0.0
    %606 = vmatprep.subr.mxu0 0.0
    %607 = vmatpush1.msra.mxu0 0.0
    %608 = vmatprep.subr.mxu0 0.0
    %609 = vmatpush1.msra.mxu0 0.0
    %610 = vmatprep.subr.mxu0 0.0
    %611 = vmatpush1.msra.mxu0 0.0
    %612 = vmatprep.subr.mxu0 0.0
    %613 = vmatpush1.msra.mxu0 0.0
    %614 = vmatprep.mubr.f32.mxu0 0.0
    %615 = vmatmul.mubr.f32.gmra.mrb[0].mxu0 %v545
    %v616 = vpop.f32.mrb[0].mxu0
    %v617 = vadd.f32 0.0, %v616
    %v618 = vpop.f32.mrb[0].mxu0
    %619 = vmatprep.mubr.f32.mxu0 0.0
    %620 = vmatmul.mubr.f32.gmra.mrb[0].mxu0 %v548
    %v621 = vpop.f32.mrb[0].mxu0
    %v622 = vadd.f32 0.0, %v621
    %v623 = vpop.f32.mrb[0].mxu0
    %624 = vdwg.mxu0
    %v625 = vld [vmem:[%s4] sm:$0xff]
    %v626 = vld [vmem:[%s4 + $0x8] sm:$0xff]
    %v627 = vld [vmem:[%s4 + $0x10] sm:$0xff]
    %v628 = vld [vmem:[%s4 + $0x18] sm:$0xff]
    %v629 = vld [vmem:[%s4 + $0x20] sm:$0xff]
    %v630 = vld [vmem:[%s4 + $0x28] sm:$0xff]
    %v631 = vld [vmem:[%s4 + $0x30] sm:$0xff]
    %v632 = vld [vmem:[%s4 + $0x38] sm:$0xff]
    %s633 = scalar_lea.vmem %s4, 64
    %v634 = vld [vmem:[%s633] sm:$0xff]
    %v635 = vld [vmem:[%s633 + $0x8] sm:$0xff]
    %v636 = vld [vmem:[%s633 + $0x10] sm:$0xff]
    %v637 = vld [vmem:[%s633 + $0x18] sm:$0xff]
    %v638 = vld [vmem:[%s633 + $0x20] sm:$0xff]
    %v639 = vld [vmem:[%s633 + $0x28] sm:$0xff]
    %v640 = vld [vmem:[%s633 + $0x30] sm:$0xff]
    %v641 = vld [vmem:[%s633 + $0x38] sm:$0xff]
    %v643 = vsel %vm265, %v456, 0
    %v646 = vsel %vm265, %v457, 0
    %648 = vmatprep.subr.mxu0 0.0
    %649 = vmatpush1.msra.mxu0 %v634
    %650 = vmatprep.subr.mxu0 0.0
    %651 = vmatpush1.msra.mxu0 %v635
    %652 = vmatprep.subr.mxu0 0.0
    %653 = vmatpush1.msra.mxu0 %v636
    %654 = vmatprep.subr.mxu0 0.0
    %655 = vmatpush1.msra.mxu0 %v637
    %656 = vmatprep.subr.mxu0 0.0
    %657 = vmatpush1.msra.mxu0 %v638
    %658 = vmatprep.subr.mxu0 0.0
    %659 = vmatpush1.msra.mxu0 %v639
    %660 = vmatprep.subr.mxu0 0.0
    %661 = vmatpush1.msra.mxu0 %v640
    %662 = vmatprep.subr.mxu0 0.0
    %663 = vmatpush1.msra.mxu0 %v641
    %664 = vmatprep.subr.mxu0 0.0
    %665 = vmatpush1.msra.mxu0 0.0
    %666 = vmatprep.subr.mxu0 0.0
    %667 = vmatpush1.msra.mxu0 0.0
    %668 = vmatprep.subr.mxu0 0.0
    %669 = vmatpush1.msra.mxu0 0.0
    %670 = vmatprep.subr.mxu0 0.0
    %671 = vmatpush1.msra.mxu0 0.0
    %672 = vmatprep.subr.mxu0 0.0
    %673 = vmatpush1.msra.mxu0 0.0
    %674 = vmatprep.subr.mxu0 0.0
    %675 = vmatpush1.msra.mxu0 0.0
    %676 = vmatprep.subr.mxu0 0.0
    %677 = vmatpush1.msra.mxu0 0.0
    %678 = vmatprep.subr.mxu0 0.0
    %679 = vmatpush1.msra.mxu0 0.0
    %680 = vmatprep.subr.mxu0 0.0
    %681 = vmatpush1.msra.mxu0 0.0
    %682 = vmatprep.subr.mxu0 0.0
    %683 = vmatpush1.msra.mxu0 0.0
    %684 = vmatprep.subr.mxu0 0.0
    %685 = vmatpush1.msra.mxu0 0.0
    %686 = vmatprep.subr.mxu0 0.0
    %687 = vmatpush1.msra.mxu0 0.0
    %688 = vmatprep.subr.mxu0 0.0
    %689 = vmatpush1.msra.mxu0 0.0
    %690 = vmatprep.subr.mxu0 0.0
    %691 = vmatpush1.msra.mxu0 0.0
    %692 = vmatprep.subr.mxu0 0.0
    %693 = vmatpush1.msra.mxu0 0.0
    %694 = vmatprep.subr.mxu0 0.0
    %695 = vmatpush1.msra.mxu0 0.0
    %696 = vmatprep.subr.mxu0 0.0
    %697 = vmatpush1.msra.mxu0 0.0
    %698 = vmatprep.subr.mxu0 0.0
    %699 = vmatpush1.msra.mxu0 0.0
    %700 = vmatprep.subr.mxu0 0.0
    %701 = vmatpush1.msra.mxu0 0.0
    %702 = vmatprep.subr.mxu0 0.0
    %703 = vmatpush1.msra.mxu0 0.0
    %704 = vmatprep.subr.mxu0 0.0
    %705 = vmatpush1.msra.mxu0 0.0
    %706 = vmatprep.subr.mxu0 0.0
    %707 = vmatpush1.msra.mxu0 0.0
    %708 = vmatprep.subr.mxu0 0.0
    %709 = vmatpush1.msra.mxu0 0.0
    %710 = vmatprep.subr.mxu0 0.0
    %711 = vmatpush1.msra.mxu0 0.0
    %712 = vmatprep.mubr.f32.mxu0 0.0
    %713 = vmatmul.mubr.f32.gmra.mrb[0].mxu0 %v643
    %v714 = vpop.f32.mrb[0].mxu0
    %v715 = vadd.f32 0.0, %v714
    %v716 = vpop.f32.mrb[0].mxu0
    %717 = vmatprep.mubr.f32.mxu0 0.0
    %718 = vmatmul.mubr.f32.gmra.mrb[0].mxu0 %v646
    %v719 = vpop.f32.mrb[0].mxu0
    %v720 = vadd.f32 0.0, %v719
    %v721 = vpop.f32.mrb[0].mxu0
    %722 = vdwg.mxu0
    %v724 = vsel %vm265, %v534, 0
    %v727 = vsel %vm265, %v539, 0
    %729 = vmatprep.subr.mxu0 0.0
    %730 = vmatpush1.msra.mxu0 %v625
    %731 = vmatprep.subr.mxu0 0.0
    %732 = vmatpush1.msra.mxu0 %v626
    %733 = vmatprep.subr.mxu0 0.0
    %734 = vmatpush1.msra.mxu0 %v627
    %735 = vmatprep.subr.mxu0 0.0
    %736 = vmatpush1.msra.mxu0 %v628
    %737 = vmatprep.subr.mxu0 0.0
    %738 = vmatpush1.msra.mxu0 %v629
    %739 = vmatprep.subr.mxu0 0.0
    %740 = vmatpush1.msra.mxu0 %v630
    %741 = vmatprep.subr.mxu0 0.0
    %742 = vmatpush1.msra.mxu0 %v631
    %743 = vmatprep.subr.mxu0 0.0
    %744 = vmatpush1.msra.mxu0 %v632
    %745 = vmatprep.subr.mxu0 0.0
    %746 = vmatpush1.msra.mxu0 0.0
    %747 = vmatprep.subr.mxu0 0.0
    %748 = vmatpush1.msra.mxu0 0.0
    %749 = vmatprep.subr.mxu0 0.0
    %750 = vmatpush1.msra.mxu0 0.0
    %751 = vmatprep.subr.mxu0 0.0
    %752 = vmatpush1.msra.mxu0 0.0
    %753 = vmatprep.subr.mxu0 0.0
    %754 = vmatpush1.msra.mxu0 0.0
    %755 = vmatprep.subr.mxu0 0.0
    %756 = vmatpush1.msra.mxu0 0.0
    %757 = vmatprep.subr.mxu0 0.0
    %758 = vmatpush1.msra.mxu0 0.0
    %759 = vmatprep.subr.mxu0 0.0
    %760 = vmatpush1.msra.mxu0 0.0
    %761 = vmatprep.subr.mxu0 0.0
    %762 = vmatpush1.msra.mxu0 0.0
    %763 = vmatprep.subr.mxu0 0.0
    %764 = vmatpush1.msra.mxu0 0.0
    %765 = vmatprep.subr.mxu0 0.0
    %766 = vmatpush1.msra.mxu0 0.0
    %767 = vmatprep.subr.mxu0 0.0
    %768 = vmatpush1.msra.mxu0 0.0
    %769 = vmatprep.subr.mxu0 0.0
    %770 = vmatpush1.msra.mxu0 0.0
    %771 = vmatprep.subr.mxu0 0.0
    %772 = vmatpush1.msra.mxu0 0.0
    %773 = vmatprep.subr.mxu0 0.0
    %774 = vmatpush1.msra.mxu0 0.0
    %775 = vmatprep.subr.mxu0 0.0
    %776 = vmatpush1.msra.mxu0 0.0
    %777 = vmatprep.subr.mxu0 0.0
    %778 = vmatpush1.msra.mxu0 0.0
    %779 = vmatprep.subr.mxu0 0.0
    %780 = vmatpush1.msra.mxu0 0.0
    %781 = vmatprep.subr.mxu0 0.0
    %782 = vmatpush1.msra.mxu0 0.0
    %783 = vmatprep.subr.mxu0 0.0
    %784 = vmatpush1.msra.mxu0 0.0
    %785 = vmatprep.subr.mxu0 0.0
    %786 = vmatpush1.msra.mxu0 0.0
    %787 = vmatprep.subr.mxu0 0.0
    %788 = vmatpush1.msra.mxu0 0.0
    %789 = vmatprep.subr.mxu0 0.0
    %790 = vmatpush1.msra.mxu0 0.0
    %791 = vmatprep.subr.mxu0 0.0
    %792 = vmatpush1.msra.mxu0 0.0
    %793 = vmatprep.mubr.f32.mxu0 0.0
    %794 = vmatmul.mubr.f32.gmra.mrb[0].mxu0 %v724
    %v795 = vpop.f32.mrb[0].mxu0
    %v796 = vadd.f32 %v715, %v795
    %v797 = vpop.f32.mrb[0].mxu0
    %798 = vmatprep.mubr.f32.mxu0 0.0
    %799 = vmatmul.mubr.f32.gmra.mrb[0].mxu0 %v727
    %v800 = vpop.f32.mrb[0].mxu0
    %v801 = vadd.f32 %v720, %v800
    %v802 = vpop.f32.mrb[0].mxu0
    %803 = vdwg.mxu0
    %s804 = scalar_lea.vmem %s4, 128
    %v805 = vld [vmem:[%s804] sm:$0xff]
    %v806 = vld [vmem:[%s804 + $0x8] sm:$0xff]
    %v807 = vld [vmem:[%s804 + $0x10] sm:$0xff]
    %v808 = vld [vmem:[%s804 + $0x18] sm:$0xff]
    %v809 = vld [vmem:[%s804 + $0x20] sm:$0xff]
    %v810 = vld [vmem:[%s804 + $0x28] sm:$0xff]
    %v811 = vld [vmem:[%s804 + $0x30] sm:$0xff]
    %v812 = vld [vmem:[%s804 + $0x38] sm:$0xff]
    %v814 = vsel %vm265, %v617, 0
    %v817 = vsel %vm265, %v622, 0
    %819 = vmatprep.subr.mxu0 0.0
    %820 = vmatpush1.msra.mxu0 %v805
    %821 = vmatprep.subr.mxu0 0.0
    %822 = vmatpush1.msra.mxu0 %v806
    %823 = vmatprep.subr.mxu0 0.0
    %824 = vmatpush1.msra.mxu0 %v807
    %825 = vmatprep.subr.mxu0 0.0
    %826 = vmatpush1.msra.mxu0 %v808
    %827 = vmatprep.subr.mxu0 0.0
    %828 = vmatpush1.msra.mxu0 %v809
    %829 = vmatprep.subr.mxu0 0.0
    %830 = vmatpush1.msra.mxu0 %v810
    %831 = vmatprep.subr.mxu0 0.0
    %832 = vmatpush1.msra.mxu0 %v811
    %833 = vmatprep.subr.mxu0 0.0
    %834 = vmatpush1.msra.mxu0 %v812
    %835 = vmatprep.subr.mxu0 0.0
    %836 = vmatpush1.msra.mxu0 0.0
    %837 = vmatprep.subr.mxu0 0.0
    %838 = vmatpush1.msra.mxu0 0.0
    %839 = vmatprep.subr.mxu0 0.0
    %840 = vmatpush1.msra.mxu0 0.0
    %841 = vmatprep.subr.mxu0 0.0
    %842 = vmatpush1.msra.mxu0 0.0
    %843 = vmatprep.subr.mxu0 0.0
    %844 = vmatpush1.msra.mxu0 0.0
    %845 = vmatprep.subr.mxu0 0.0
    %846 = vmatpush1.msra.mxu0 0.0
    %847 = vmatprep.subr.mxu0 0.0
    %848 = vmatpush1.msra.mxu0 0.0
    %849 = vmatprep.subr.mxu0 0.0
    %850 = vmatpush1.msra.mxu0 0.0
    %851 = vmatprep.subr.mxu0 0.0
    %852 = vmatpush1.msra.mxu0 0.0
    %853 = vmatprep.subr.mxu0 0.0
    %854 = vmatpush1.msra.mxu0 0.0
    %855 = vmatprep.subr.mxu0 0.0
    %856 = vmatpush1.msra.mxu0 0.0
    %857 = vmatprep.subr.mxu0 0.0
    %858 = vmatpush1.msra.mxu0 0.0
    %859 = vmatprep.subr.mxu0 0.0
    %860 = vmatpush1.msra.mxu0 0.0
    %861 = vmatprep.subr.mxu0 0.0
    %862 = vmatpush1.msra.mxu0 0.0
    %863 = vmatprep.subr.mxu0 0.0
    %864 = vmatpush1.msra.mxu0 0.0
    %865 = vmatprep.subr.mxu0 0.0
    %866 = vmatpush1.msra.mxu0 0.0
    %867 = vmatprep.subr.mxu0 0.0
    %868 = vmatpush1.msra.mxu0 0.0
    %869 = vmatprep.subr.mxu0 0.0
    %870 = vmatpush1.msra.mxu0 0.0
    %871 = vmatprep.subr.mxu0 0.0
    %872 = vmatpush1.msra.mxu0 0.0
    %873 = vmatprep.subr.mxu0 0.0
    %874 = vmatpush1.msra.mxu0 0.0
    %875 = vmatprep.subr.mxu0 0.0
    %876 = vmatpush1.msra.mxu0 0.0
    %877 = vmatprep.subr.mxu0 0.0
    %878 = vmatpush1.msra.mxu0 0.0
    %879 = vmatprep.subr.mxu0 0.0
    %880 = vmatpush1.msra.mxu0 0.0
    %881 = vmatprep.subr.mxu0 0.0
    %882 = vmatpush1.msra.mxu0 0.0
    %883 = vmatprep.mubr.f32.mxu0 0.0
    %884 = vmatmul.mubr.f32.gmra.mrb[0].mxu0 %v814
    %v885 = vpop.f32.mrb[0].mxu0
    %v886 = vadd.f32 0.0, %v885
    %v887 = vpop.f32.mrb[0].mxu0
    %888 = vmatprep.mubr.f32.mxu0 0.0
    %889 = vmatmul.mubr.f32.gmra.mrb[0].mxu0 %v817
    %v890 = vpop.f32.mrb[0].mxu0
    %v891 = vadd.f32 0.0, %v890
    %v892 = vpop.f32.mrb[0].mxu0
    %893 = vdwg.mxu0
    %v894 = vadd.f32 %v796, %v886
    %v895 = vadd.f32 %v801, %v891
    %v896 = vld [vmem:[#allocation5] sm:$0x1]
    %v897 = vld [vmem:[#allocation7] sm:$0x1]
    %v898 = vsel %vm265, %v894, 0.0
    %v899 = vsel %vm265, %v895, 0.0
    %v900 = vadd.f32 %v898, %v899
    %v901 = vrot.slane %v900, 4
    %v902 = vadd.f32 %v900, %v901
    %v903 = vrot.slane %v902, 2
    %v904 = vadd.f32 %v902, %v903
    %v905 = vrot.slane %v904, 1
    %v906 = vadd.f32 %v904, %v905
    %v908 = vsel %vm265, %v906, 0
    %910 = vmatprep.subr.mxu0 0.0
    %911 = vmatpush1.msra.mxu0 %v257
    %912 = vmatprep.subr.mxu0 0.0
    %913 = vmatpush1.msra.mxu0 %v258
    %914 = vmatprep.subr.mxu0 0.0
    %915 = vmatpush1.msra.mxu0 %v259
    %916 = vmatprep.subr.mxu0 0.0
    %917 = vmatpush1.msra.mxu0 %v260
    %918 = vmatprep.subr.mxu0 0.0
    %919 = vmatpush1.msra.mxu0 %v261
    %920 = vmatprep.subr.mxu0 0.0
    %921 = vmatpush1.msra.mxu0 %v262
    %922 = vmatprep.subr.mxu0 0.0
    %923 = vmatpush1.msra.mxu0 %v263
    %924 = vmatprep.subr.mxu0 0.0
    %925 = vmatpush1.msra.mxu0 %v264
    %926 = vmatprep.subr.mxu0 0.0
    %927 = vmatpush1.msra.mxu0 0.0
    %928 = vmatprep.subr.mxu0 0.0
    %929 = vmatpush1.msra.mxu0 0.0
    %930 = vmatprep.subr.mxu0 0.0
    %931 = vmatpush1.msra.mxu0 0.0
    %932 = vmatprep.subr.mxu0 0.0
    %933 = vmatpush1.msra.mxu0 0.0
    %934 = vmatprep.subr.mxu0 0.0
    %935 = vmatpush1.msra.mxu0 0.0
    %936 = vmatprep.subr.mxu0 0.0
    %937 = vmatpush1.msra.mxu0 0.0
    %938 = vmatprep.subr.mxu0 0.0
    %939 = vmatpush1.msra.mxu0 0.0
    %940 = vmatprep.subr.mxu0 0.0
    %941 = vmatpush1.msra.mxu0 0.0
    %942 = vmatprep.subr.mxu0 0.0
    %943 = vmatpush1.msra.mxu0 0.0
    %944 = vmatprep.subr.mxu0 0.0
    %945 = vmatpush1.msra.mxu0 0.0
    %946 = vmatprep.subr.mxu0 0.0
    %947 = vmatpush1.msra.mxu0 0.0
    %948 = vmatprep.subr.mxu0 0.0
    %949 = vmatpush1.msra.mxu0 0.0
    %950 = vmatprep.subr.mxu0 0.0
    %951 = vmatpush1.msra.mxu0 0.0
    %952 = vmatprep.subr.mxu0 0.0
    %953 = vmatpush1.msra.mxu0 0.0
    %954 = vmatprep.subr.mxu0 0.0
    %955 = vmatpush1.msra.mxu0 0.0
    %956 = vmatprep.subr.mxu0 0.0
    %957 = vmatpush1.msra.mxu0 0.0
    %958 = vmatprep.subr.mxu0 0.0
    %959 = vmatpush1.msra.mxu0 0.0
    %960 = vmatprep.subr.mxu0 0.0
    %961 = vmatpush1.msra.mxu0 0.0
    %962 = vmatprep.subr.mxu0 0.0
    %963 = vmatpush1.msra.mxu0 0.0
    %964 = vmatprep.subr.mxu0 0.0
    %965 = vmatpush1.msra.mxu0 0.0
    %966 = vmatprep.subr.mxu0 0.0
    %967 = vmatpush1.msra.mxu0 0.0
    %968 = vmatprep.subr.mxu0 0.0
    %969 = vmatpush1.msra.mxu0 0.0
    %970 = vmatprep.subr.mxu0 0.0
    %971 = vmatpush1.msra.mxu0 0.0
    %972 = vmatprep.subr.mxu0 0.0
    %973 = vmatpush1.msra.mxu0 0.0
    %974 = vmatprep.mubr.f32.mxu0 0.0
    %975 = vmatmul.mubr.f32.gmra.mrb[0].mxu0 %v908
    %v976 = vpop.f32.mrb[0].mxu0
    %v977 = vadd.f32 0.0, %v976
    %v978 = vpop.f32.mrb[0].mxu0
    %979 = vdwg.mxu0
    %v980 = vlaneseq
    %v981 = vshrl.u32 %v980, 7
    %v982 = vsub.s32 0, %v981
    %v983 = vrot.slane %v977, %v982
    %v984 = vsub.f32 %v894, %v983
    %v985 = vsub.f32 %v895, %v983
    %v986 = vmul.f32 %v984, %v984
    %v987 = vmul.f32 %v985, %v985
    %v988 = vsel %vm265, %v986, 0.0
    %v989 = vsel %vm265, %v987, 0.0
    %v990 = vadd.f32 %v988, %v989
    %v991 = vrot.slane %v990, 4
    %v992 = vadd.f32 %v990, %v991
    %v993 = vrot.slane %v992, 2
    %v994 = vadd.f32 %v992, %v993
    %v995 = vrot.slane %v994, 1
    %v996 = vadd.f32 %v994, %v995
    %v998 = vsel %vm265, %v996, 0
    %1000 = vmatprep.subr.mxu0 0.0
    %1001 = vmatpush1.msra.mxu0 %v257
    %1002 = vmatprep.subr.mxu0 0.0
    %1003 = vmatpush1.msra.mxu0 %v258
    %1004 = vmatprep.subr.mxu0 0.0
    %1005 = vmatpush1.msra.mxu0 %v259
    %1006 = vmatprep.subr.mxu0 0.0
    %1007 = vmatpush1.msra.mxu0 %v260
    %1008 = vmatprep.subr.mxu0 0.0
    %1009 = vmatpush1.msra.mxu0 %v261
    %1010 = vmatprep.subr.mxu0 0.0
    %1011 = vmatpush1.msra.mxu0 %v262
    %1012 = vmatprep.subr.mxu0 0.0
    %1013 = vmatpush1.msra.mxu0 %v263
    %1014 = vmatprep.subr.mxu0 0.0
    %1015 = vmatpush1.msra.mxu0 %v264
    %1016 = vmatprep.subr.mxu0 0.0
    %1017 = vmatpush1.msra.mxu0 0.0
    %1018 = vmatprep.subr.mxu0 0.0
    %1019 = vmatpush1.msra.mxu0 0.0
    %1020 = vmatprep.subr.mxu0 0.0
    %1021 = vmatpush1.msra.mxu0 0.0
    %1022 = vmatprep.subr.mxu0 0.0
    %1023 = vmatpush1.msra.mxu0 0.0
    %1024 = vmatprep.subr.mxu0 0.0
    %1025 = vmatpush1.msra.mxu0 0.0
    %1026 = vmatprep.subr.mxu0 0.0
    %1027 = vmatpush1.msra.mxu0 0.0
    %1028 = vmatprep.subr.mxu0 0.0
    %1029 = vmatpush1.msra.mxu0 0.0
    %1030 = vmatprep.subr.mxu0 0.0
    %1031 = vmatpush1.msra.mxu0 0.0
    %1032 = vmatprep.subr.mxu0 0.0
    %1033 = vmatpush1.msra.mxu0 0.0
    %1034 = vmatprep.subr.mxu0 0.0
    %1035 = vmatpush1.msra.mxu0 0.0
    %1036 = vmatprep.subr.mxu0 0.0
    %1037 = vmatpush1.msra.mxu0 0.0
    %1038 = vmatprep.subr.mxu0 0.0
    %1039 = vmatpush1.msra.mxu0 0.0
    %1040 = vmatprep.subr.mxu0 0.0
    %1041 = vmatpush1.msra.mxu0 0.0
    %1042 = vmatprep.subr.mxu0 0.0
    %1043 = vmatpush1.msra.mxu0 0.0
    %1044 = vmatprep.subr.mxu0 0.0
    %1045 = vmatpush1.msra.mxu0 0.0
    %1046 = vmatprep.subr.mxu0 0.0
    %1047 = vmatpush1.msra.mxu0 0.0
    %1048 = vmatprep.subr.mxu0 0.0
    %1049 = vmatpush1.msra.mxu0 0.0
    %1050 = vmatprep.subr.mxu0 0.0
    %1051 = vmatpush1.msra.mxu0 0.0
    %1052 = vmatprep.subr.mxu0 0.0
    %1053 = vmatpush1.msra.mxu0 0.0
    %1054 = vmatprep.subr.mxu0 0.0
    %1055 = vmatpush1.msra.mxu0 0.0
    %1056 = vmatprep.subr.mxu0 0.0
    %1057 = vmatpush1.msra.mxu0 0.0
    %1058 = vmatprep.subr.mxu0 0.0
    %1059 = vmatpush1.msra.mxu0 0.0
    %1060 = vmatprep.subr.mxu0 0.0
    %1061 = vmatpush1.msra.mxu0 0.0
    %1062 = vmatprep.subr.mxu0 0.0
    %1063 = vmatpush1.msra.mxu0 0.0
    %1064 = vmatprep.mubr.f32.mxu0 0.0
    %1065 = vmatmul.mubr.f32.gmra.mrb[0].mxu0 %v998
    %v1066 = vpop.f32.mrb[0].mxu0
    %v1067 = vadd.f32 1e-05, %v1066
    %v1068 = vpop.f32.mrb[0].mxu0
    %1069 = vdwg.mxu0
    %v1070 = vrsqrt.pop %v1067
    %v1071 = vmul.f32 %v896, %v1070
    %v1073 = vlaneseq
    %v1074 = vshrl.u32 %v1073, 7
    %v1075 = vsub.s32 0, %v1074
    %v1076 = vrot.slane %v1071, %v1075
    %v1078 = vmul.f32 %v984, %v1076
    %v1079 = vmul.f32 %v985, %v1076
    %v1081 = vlaneseq
    %v1082 = vshrl.u32 %v1081, 7
    %v1083 = vsub.s32 0, %v1082
    %v1084 = vrot.slane %v897, %v1083
    %v1086 = vadd.f32 %v1078, %v1084
    %v1087 = vadd.f32 %v1079, %v1084
    %v1088 = vmax.f32 %v1086, 0.0
    %v1089 = vmax.f32 %v1087, 0.0
    %v1090 = vld [vmem:[#allocation8] sm:$0xff]
    %v1091 = vld [vmem:[#allocation8 + $0x8] sm:$0xff]
    %v1092 = vld [vmem:[#allocation8 + $0x10] sm:$0xff]
    %v1093 = vld [vmem:[#allocation8 + $0x18] sm:$0xff]
    %v1094 = vld [vmem:[#allocation8 + $0x20] sm:$0xff]
    %v1095 = vld [vmem:[#allocation8 + $0x28] sm:$0xff]
    %v1096 = vld [vmem:[#allocation8 + $0x30] sm:$0xff]
    %v1097 = vld [vmem:[#allocation8 + $0x38] sm:$0xff]
    %v1099 = vsel %vm265, %v1088, 0
    %v1102 = vsel %vm265, %v1089, 0
    %1104 = vmatprep.subr.mxu0 0.0
    %1105 = vmatpush1.msra.mxu0 %v1090
    %1106 = vmatprep.subr.mxu0 0.0
    %1107 = vmatpush1.msra.mxu0 %v1091
    %1108 = vmatprep.subr.mxu0 0.0
    %1109 = vmatpush1.msra.mxu0 %v1092
    %1110 = vmatprep.subr.mxu0 0.0
    %1111 = vmatpush1.msra.mxu0 %v1093
    %1112 = vmatprep.subr.mxu0 0.0
    %1113 = vmatpush1.msra.mxu0 %v1094
    %1114 = vmatprep.subr.mxu0 0.0
    %1115 = vmatpush1.msra.mxu0 %v1095
    %1116 = vmatprep.subr.mxu0 0.0
    %1117 = vmatpush1.msra.mxu0 %v1096
    %1118 = vmatprep.subr.mxu0 0.0
    %1119 = vmatpush1.msra.mxu0 %v1097
    %1120 = vmatprep.subr.mxu0 0.0
    %1121 = vmatpush1.msra.mxu0 0.0
    %1122 = vmatprep.subr.mxu0 0.0
    %1123 = vmatpush1.msra.mxu0 0.0
    %1124 = vmatprep.subr.mxu0 0.0
    %1125 = vmatpush1.msra.mxu0 0.0
    %1126 = vmatprep.subr.mxu0 0.0
    %1127 = vmatpush1.msra.mxu0 0.0
    %1128 = vmatprep.subr.mxu0 0.0
    %1129 = vmatpush1.msra.mxu0 0.0
    %1130 = vmatprep.subr.mxu0 0.0
    %1131 = vmatpush1.msra.mxu0 0.0
    %1132 = vmatprep.subr.mxu0 0.0
    %1133 = vmatpush1.msra.mxu0 0.0
    %1134 = vmatprep.subr.mxu0 0.0
    %1135 = vmatpush1.msra.mxu0 0.0
    %1136 = vmatprep.subr.mxu0 0.0
    %1137 = vmatpush1.msra.mxu0 0.0
    %1138 = vmatprep.subr.mxu0 0.0
    %1139 = vmatpush1.msra.mxu0 0.0
    %1140 = vmatprep.subr.mxu0 0.0
    %1141 = vmatpush1.msra.mxu0 0.0
    %1142 = vmatprep.subr.mxu0 0.0
    %1143 = vmatpush1.msra.mxu0 0.0
    %1144 = vmatprep.subr.mxu0 0.0
    %1145 = vmatpush1.msra.mxu0 0.0
    %1146 = vmatprep.subr.mxu0 0.0
    %1147 = vmatpush1.msra.mxu0 0.0
    %1148 = vmatprep.subr.mxu0 0.0
    %1149 = vmatpush1.msra.mxu0 0.0
    %1150 = vmatprep.subr.mxu0 0.0
    %1151 = vmatpush1.msra.mxu0 0.0
    %1152 = vmatprep.subr.mxu0 0.0
    %1153 = vmatpush1.msra.mxu0 0.0
    %1154 = vmatprep.subr.mxu0 0.0
    %1155 = vmatpush1.msra.mxu0 0.0
    %1156 = vmatprep.subr.mxu0 0.0
    %1157 = vmatpush1.msra.mxu0 0.0
    %1158 = vmatprep.subr.mxu0 0.0
    %1159 = vmatpush1.msra.mxu0 0.0
    %1160 = vmatprep.subr.mxu0 0.0
    %1161 = vmatpush1.msra.mxu0 0.0
    %1162 = vmatprep.subr.mxu0 0.0
    %1163 = vmatpush1.msra.mxu0 0.0
    %1164 = vmatprep.subr.mxu0 0.0
    %1165 = vmatpush1.msra.mxu0 0.0
    %1166 = vmatprep.subr.mxu0 0.0
    %1167 = vmatpush1.msra.mxu0 0.0
    %1168 = vmatprep.mubr.f32.mxu0 0.0
    %1169 = vmatmul.mubr.f32.gmra.mrb[0].mxu0 %v1099
    %v1170 = vpop.f32.mrb[0].mxu0
    %v1171 = vadd.f32 0.0, %v1170
    %v1172 = vpop.f32.mrb[0].mxu0
    %1173 = vmatprep.mubr.f32.mxu0 0.0
    %1174 = vmatmul.mubr.f32.gmra.mrb[0].mxu0 %v1102
    %v1175 = vpop.f32.mrb[0].mxu0
    %v1176 = vadd.f32 0.0, %v1175
    %v1177 = vpop.f32.mrb[0].mxu0
    %1178 = vdwg.mxu0
    %v1179 = vld [vmem:[#allocation10] sm:$0x1]
    %v1180 = vld [vmem:[#allocation11] sm:$0x1]
    %v1181 = vld [vmem:[#allocation16] sm:$0xff]
    %v1182 = vld [vmem:[#allocation16 + $0x8] sm:$0xff]
    %v1183 = vld [vmem:[#allocation16 + $0x10] sm:$0xff]
    %v1184 = vld [vmem:[#allocation16 + $0x18] sm:$0xff]
    %v1185 = vld [vmem:[#allocation16 + $0x20] sm:$0xff]
    %v1186 = vld [vmem:[#allocation16 + $0x28] sm:$0xff]
    %v1187 = vld [vmem:[#allocation16 + $0x30] sm:$0xff]
    %v1188 = vld [vmem:[#allocation16 + $0x38] sm:$0xff]
    %v1189 = vld [vmem:[#allocation16 + $0x40] sm:$0xff]
    %v1190 = vld [vmem:[#allocation16 + $0x48] sm:$0xff]
    %v1191 = vld [vmem:[#allocation16 + $0x50] sm:$0xff]
    %v1192 = vld [vmem:[#allocation16 + $0x58] sm:$0xff]
    %v1193 = vld [vmem:[#allocation16 + $0x60] sm:$0xff]
    %v1194 = vld [vmem:[#allocation16 + $0x68] sm:$0xff]
    %v1195 = vld [vmem:[#allocation16 + $0x70] sm:$0xff]
    %v1196 = vld [vmem:[#allocation16 + $0x78] sm:$0xff]
    %v1197 = vadd.f32 %v1171, %v1176
    %v1198 = vrot.slane %v1197, 4
    %v1199 = vadd.f32 %v1197, %v1198
    %v1200 = vrot.slane %v1199, 2
    %v1201 = vadd.f32 %v1199, %v1200
    %v1202 = vrot.slane %v1201, 1
    %v1203 = vadd.f32 %v1201, %v1202
    %1204 = vmatprep.subr.mxu0 0.0
    %1205 = vmatpush1.msra.mxu0 %v1181
    %1206 = vmatprep.subr.mxu0 0.0
    %1207 = vmatpush1.msra.mxu0 %v1182
    %1208 = vmatprep.subr.mxu0 0.0
    %1209 = vmatpush1.msra.mxu0 %v1183
    %1210 = vmatprep.subr.mxu0 0.0
    %1211 = vmatpush1.msra.mxu0 %v1184
    %1212 = vmatprep.subr.mxu0 0.0
    %1213 = vmatpush1.msra.mxu0 %v1185
    %1214 = vmatprep.subr.mxu0 0.0
    %1215 = vmatpush1.msra.mxu0 %v1186
    %1216 = vmatprep.subr.mxu0 0.0
    %1217 = vmatpush1.msra.mxu0 %v1187
    %1218 = vmatprep.subr.mxu0 0.0
    %1219 = vmatpush1.msra.mxu0 %v1188
    %1220 = vmatprep.subr.mxu0 0.0
    %1221 = vmatpush1.msra.mxu0 %v1189
    %1222 = vmatprep.subr.mxu0 0.0
    %1223 = vmatpush1.msra.mxu0 %v1190
    %1224 = vmatprep.subr.mxu0 0.0
    %1225 = vmatpush1.msra.mxu0 %v1191
    %1226 = vmatprep.subr.mxu0 0.0
    %1227 = vmatpush1.msra.mxu0 %v1192
    %1228 = vmatprep.subr.mxu0 0.0
    %1229 = vmatpush1.msra.mxu0 %v1193
    %1230 = vmatprep.subr.mxu0 0.0
    %1231 = vmatpush1.msra.mxu0 %v1194
    %1232 = vmatprep.subr.mxu0 0.0
    %1233 = vmatpush1.msra.mxu0 %v1195
    %1234 = vmatprep.subr.mxu0 0.0
    %1235 = vmatpush1.msra.mxu0 %v1196
    %1236 = vmatprep.subr.mxu0 0.0
    %1237 = vmatpush1.msra.mxu0 0.0
    %1238 = vmatprep.subr.mxu0 0.0
    %1239 = vmatpush1.msra.mxu0 0.0
    %1240 = vmatprep.subr.mxu0 0.0
    %1241 = vmatpush1.msra.mxu0 0.0
    %1242 = vmatprep.subr.mxu0 0.0
    %1243 = vmatpush1.msra.mxu0 0.0
    %1244 = vmatprep.subr.mxu0 0.0
    %1245 = vmatpush1.msra.mxu0 0.0
    %1246 = vmatprep.subr.mxu0 0.0
    %1247 = vmatpush1.msra.mxu0 0.0
    %1248 = vmatprep.subr.mxu0 0.0
    %1249 = vmatpush1.msra.mxu0 0.0
    %1250 = vmatprep.subr.mxu0 0.0
    %1251 = vmatpush1.msra.mxu0 0.0
    %1252 = vmatprep.subr.mxu0 0.0
    %1253 = vmatpush1.msra.mxu0 0.0
    %1254 = vmatprep.subr.mxu0 0.0
    %1255 = vmatpush1.msra.mxu0 0.0
    %1256 = vmatprep.subr.mxu0 0.0
    %1257 = vmatpush1.msra.mxu0 0.0
    %1258 = vmatprep.subr.mxu0 0.0
    %1259 = vmatpush1.msra.mxu0 0.0
    %1260 = vmatprep.subr.mxu0 0.0
    %1261 = vmatpush1.msra.mxu0 0.0
    %1262 = vmatprep.subr.mxu0 0.0
    %1263 = vmatpush1.msra.mxu0 0.0
    %1264 = vmatprep.subr.mxu0 0.0
    %1265 = vmatpush1.msra.mxu0 0.0
    %1266 = vmatprep.subr.mxu0 0.0
    %1267 = vmatpush1.msra.mxu0 0.0
    %1268 = vmatprep.mubr.f32.mxu0 0.0
    %1269 = vmatmul.mubr.f32.gmra.mrb[0].mxu0 %v1203
    %v1270 = vpop.f32.mrb[0].mxu0
    %v1271 = vadd.f32 0.0, %v1270
    %v1272 = vpop.f32.mrb[0].mxu0
    %1273 = vdwg.mxu0
    %v1274 = vlaneseq
    %v1275 = vshrl.u32 %v1274, 7
    %v1276 = vsub.s32 0, %v1275
    %v1277 = vrot.slane %v1271, %v1276
    %v1278 = vsub.f32 %v1171, %v1277
    %v1279 = vsub.f32 %v1176, %v1277
    %v1280 = vmul.f32 %v1278, %v1278
    %v1281 = vmul.f32 %v1279, %v1279
    %v1282 = vadd.f32 %v1280, %v1281
    %v1283 = vrot.slane %v1282, 4
    %v1284 = vadd.f32 %v1282, %v1283
    %v1285 = vrot.slane %v1284, 2
    %v1286 = vadd.f32 %v1284, %v1285
    %v1287 = vrot.slane %v1286, 1
    %v1288 = vadd.f32 %v1286, %v1287
    %1289 = vmatprep.subr.mxu0 0.0
    %1290 = vmatpush1.msra.mxu0 %v1181
    %1291 = vmatprep.subr.mxu0 0.0
    %1292 = vmatpush1.msra.mxu0 %v1182
    %1293 = vmatprep.subr.mxu0 0.0
    %1294 = vmatpush1.msra.mxu0 %v1183
    %1295 = vmatprep.subr.mxu0 0.0
    %1296 = vmatpush1.msra.mxu0 %v1184
    %1297 = vmatprep.subr.mxu0 0.0
    %1298 = vmatpush1.msra.mxu0 %v1185
    %1299 = vmatprep.subr.mxu0 0.0
    %1300 = vmatpush1.msra.mxu0 %v1186
    %1301 = vmatprep.subr.mxu0 0.0
    %1302 = vmatpush1.msra.mxu0 %v1187
    %1303 = vmatprep.subr.mxu0 0.0
    %1304 = vmatpush1.msra.mxu0 %v1188
    %1305 = vmatprep.subr.mxu0 0.0
    %1306 = vmatpush1.msra.mxu0 %v1189
    %1307 = vmatprep.subr.mxu0 0.0
    %1308 = vmatpush1.msra.mxu0 %v1190
    %1309 = vmatprep.subr.mxu0 0.0
    %1310 = vmatpush1.msra.mxu0 %v1191
    %1311 = vmatprep.subr.mxu0 0.0
    %1312 = vmatpush1.msra.mxu0 %v1192
    %1313 = vmatprep.subr.mxu0 0.0
    %1314 = vmatpush1.msra.mxu0 %v1193
    %1315 = vmatprep.subr.mxu0 0.0
    %1316 = vmatpush1.msra.mxu0 %v1194
    %1317 = vmatprep.subr.mxu0 0.0
    %1318 = vmatpush1.msra.mxu0 %v1195
    %1319 = vmatprep.subr.mxu0 0.0
    %1320 = vmatpush1.msra.mxu0 %v1196
    %1321 = vmatprep.subr.mxu0 0.0
    %1322 = vmatpush1.msra.mxu0 0.0
    %1323 = vmatprep.subr.mxu0 0.0
    %1324 = vmatpush1.msra.mxu0 0.0
    %1325 = vmatprep.subr.mxu0 0.0
    %1326 = vmatpush1.msra.mxu0 0.0
    %1327 = vmatprep.subr.mxu0 0.0
    %1328 = vmatpush1.msra.mxu0 0.0
    %1329 = vmatprep.subr.mxu0 0.0
    %1330 = vmatpush1.msra.mxu0 0.0
    %1331 = vmatprep.subr.mxu0 0.0
    %1332 = vmatpush1.msra.mxu0 0.0
    %1333 = vmatprep.subr.mxu0 0.0
    %1334 = vmatpush1.msra.mxu0 0.0
    %1335 = vmatprep.subr.mxu0 0.0
    %1336 = vmatpush1.msra.mxu0 0.0
    %1337 = vmatprep.subr.mxu0 0.0
    %1338 = vmatpush1.msra.mxu0 0.0
    %1339 = vmatprep.subr.mxu0 0.0
    %1340 = vmatpush1.msra.mxu0 0.0
    %1341 = vmatprep.subr.mxu0 0.0
    %1342 = vmatpush1.msra.mxu0 0.0
    %1343 = vmatprep.subr.mxu0 0.0
    %1344 = vmatpush1.msra.mxu0 0.0
    %1345 = vmatprep.subr.mxu0 0.0
    %1346 = vmatpush1.msra.mxu0 0.0
    %1347 = vmatprep.subr.mxu0 0.0
    %1348 = vmatpush1.msra.mxu0 0.0
    %1349 = vmatprep.subr.mxu0 0.0
    %1350 = vmatpush1.msra.mxu0 0.0
    %1351 = vmatprep.subr.mxu0 0.0
    %1352 = vmatpush1.msra.mxu0 0.0
    %1353 = vmatprep.mubr.f32.mxu0 0.0
    %1354 = vmatmul.mubr.f32.gmra.mrb[0].mxu0 %v1288
    %v1355 = vpop.f32.mrb[0].mxu0
    %v1356 = vadd.f32 1e-05, %v1355
    %v1357 = vpop.f32.mrb[0].mxu0
    %1358 = vdwg.mxu0
    %v1359 = vrsqrt.pop %v1356
    %v1360 = vmul.f32 %v1179, %v1359
    %v1362 = vlaneseq
    %v1363 = vshrl.u32 %v1362, 7
    %v1364 = vsub.s32 0, %v1363
    %v1365 = vrot.slane %v1360, %v1364
    %v1367 = vmul.f32 %v1278, %v1365
    %v1368 = vmul.f32 %v1279, %v1365
    %v1370 = vlaneseq
    %v1371 = vshrl.u32 %v1370, 7
    %v1372 = vsub.s32 0, %v1371
    %v1373 = vrot.slane %v1180, %v1372
    %v1375 = vadd.f32 %v1367, %v1373
    %v1376 = vadd.f32 %v1368, %v1373
    %v1377 = vadd.f32 %v1375, %v162
    %v1378 = vadd.f32 %v1376, %v163
    %v1379 = vmax.f32 %v1377, 0.0
    %v1380 = vmax.f32 %v1378, 0.0
    %1381 = vst [vmem:[#allocation17] sm:$0xff] %v1379
    %1382 = vst [vmem:[#allocation17 + $0x8] sm:$0xff] %v1380
    // Predicated region
    $region94: #{tpu_custom_call.1} parent=1 // pred_check
      _
    $region95: #{tpu_custom_call.1} parent=1 // pred_check_branch
      %1384 = sbr.rel (0) target = $region97
    $region96: #{tpu_custom_call.1} parent=1 // pred_region
      %s1386 = ssub.s32 256, 256
      %1387 = vsyncadd [#allocation4], %s1386
      %s1388 = sshll.u32 [#allocation17], 4
      %s1389 = int_to_ptr.vmem [resolvable:$true] %s1388
      %1394 = dma.vmem_to_hbm [thread:$0]  %s1389, 256, %s14, [#allocation4], 128, 128, 8
    $region97: #{tpu_custom_call.1} parent=1 // pred_fallthru
      _
    // Predicated region
    $region98: #{tpu_custom_call.1} parent=1 // pred_check
      _
    $region99: #{tpu_custom_call.1} parent=1 // pred_check_branch
      %1396 = sbr.rel (0) target = $region101
    $region100: #{tpu_custom_call.1} parent=1 // pred_region
      %1397 = dma.done [#allocation4], 256
    $region101: #{tpu_custom_call.1} parent=1 // pred_fallthru
      _
    %1398 = vsyncpa [#allocation3], 1
    %1399 = vsyncpa [#allocation6], 1
    %1400 = vsyncpa [#allocation9], 1
    %1401 = vsyncpa [#allocation12], 1
    %1402 = vsyncpa [#allocation15], 1
    %1403 = vsyncpa [#allocation4], 1

</llo_original>
